<compile_context>
chip_gen: v7x
topology: tpu7x:2x2x1
jax: 0.10.0
libtpu: 0.0.40
codegen_flags: <defaults>
</compile_context>

<pallas_src>
import functools
import math

import jax
import jax.numpy as jnp
from jax import lax
from jax.experimental import pallas as pl
from jax.experimental.pallas import tpu as pltpu

EPS = 1e-5


def _layernorm(v, gamma, beta):
    # v: (R, E), gamma/beta: (1, E); biased variance, eps=1e-5 (PyTorch LayerNorm)
    mu = jnp.mean(v, axis=-1, keepdims=True)
    var = jnp.mean((v - mu) ** 2, axis=-1, keepdims=True)
    return (v - mu) * lax.rsqrt(var + EPS) * gamma + beta


def _gelu_exact(v):
    # PyTorch nn.GELU() default: exact erf formulation
    return 0.5 * v * (1.0 + lax.erf(v / jnp.sqrt(2.0).astype(v.dtype)))


def transformer_block_kernel(
    num_heads, head_dim,
    # refs: one batch-tile (BT, S, E) of activations + full (fused) weights
    x_ref,
    wqkv_ref, bqkv_ref, wo_ref, bo_ref,
    g1_ref, be1_ref, g2_ref, be2_ref,
    w1_ref, b1_ref, w2_ref, b2_ref,
    out_ref,
):
    BT, S, E = x_ref.shape
    H, Dh = num_heads, head_dim
    x = x_ref[...].reshape(BT * S, E)               # (R, E) f32, R = BT*S rows

    # ---- attention branch ---------------------------------------------------
    h = _layernorm(x, g1_ref[...], be1_ref[...])    # norm1(x); Q = K = V source

    # Fused QKV projection: one bf16 MXU pass (scale pre-folded into Q weights),
    # f32 accumulation + f32 bias, then a single bf16 cast for all consumers.
    qkv = (
        jnp.dot(h.astype(jnp.bfloat16), wqkv_ref[...],
                preferred_element_type=jnp.float32)
        + bqkv_ref[...]
    ).astype(jnp.bfloat16)                          # (R, 3E) bf16

    # Per-(batch, head) softmax attention; heads packed at Dh (no lane padding).
    # TODO(synk): flash/online-softmax + fori_loop for large S / many heads.
    head_cols = []
    for hd in range(H):
        c = hd * Dh
        rows = []
        for b in range(BT):
            r = b * S
            qs = qkv[r:r + S, c:c + Dh]                          # (S, Dh) bf16 (pre-scaled)
            ks = qkv[r:r + S, E + c:E + c + Dh]
            vs = qkv[r:r + S, 2 * E + c:2 * E + c + Dh]
            # Scores: contract the last (lane) dims -> no explicit K transpose.
            s = lax.dot_general(qs, ks, (((1,), (1,)), ((), ())),
                                preferred_element_type=jnp.float32)  # (S, S) f32
            s = s - jnp.max(s, axis=-1, keepdims=True)
            p = jnp.exp(s)
            p = p * pl.reciprocal(jnp.sum(p, axis=-1, keepdims=True), approx=True)
            rows.append(jnp.dot(p.astype(jnp.bfloat16), vs,
                                preferred_element_type=jnp.float32))  # (S, Dh) f32
        head_cols.append(jnp.concatenate(rows, axis=0))          # (R, Dh)
    o = jnp.concatenate(head_cols, axis=1).astype(jnp.bfloat16)  # (R, E) bf16

    # Single output-projection matmul: head accumulation happens inside the MXU.
    attn = (jnp.dot(o, wo_ref[...], preferred_element_type=jnp.float32)
            + bo_ref[...])

    # attention-weight dropout / MLP dropout are identity (eval mode).
    x1 = x + attn                                   # first residual (f32)

    # ---- MLP branch -----------------------------------------------------------
    h2 = _layernorm(x1, g2_ref[...], be2_ref[...])
    m = (jnp.dot(h2.astype(jnp.bfloat16), w1_ref[...],
                 preferred_element_type=jnp.float32) + b1_ref[...])
    m = _gelu_exact(m)
    y = (jnp.dot(m.astype(jnp.bfloat16), w2_ref[...],
                 preferred_element_type=jnp.float32) + b2_ref[...])

    out_ref[...] = (x1 + y).reshape(BT, S, E).astype(out_ref.dtype)  # second residual


def transformer_block(x, operands, num_heads, head_dim, hidden, rows_target=256):
    """x: (S, B, E) float32 (seq, batch, embed) -> (S, B, E) float32."""
    S, B, E = x.shape
    QKV = 3 * E

    # Batch-tile so each grid step feeds ~rows_target rows to the MXU
    # (256 fills the 2x256^2 MXU on v6e/v7x; v5e would prefer 128).
    bt = max(1, min(B, rows_target // max(S, 1)))
    while B % bt:
        bt -= 1
    grid = (B // bt,)

    # Batch-major so every grid block is an (8,128)-friendly (bt, S, E) slab.
    xb = jnp.transpose(x, (1, 0, 2))                # (B, S, E)

    # All weight index maps are constant -> the pipeline fetches them once.
    wspec = lambda shape: pl.BlockSpec(shape, lambda b: (0, 0))

    kernel = functools.partial(transformer_block_kernel, num_heads, head_dim)

    flops = 2 * B * (
        S * E * QKV                          # fused QKV projection
        + num_heads * 2 * S * S * head_dim   # scores + P@V
        + S * E * E                          # output projection
        + 2 * S * E * hidden                 # MLP
    )
    transcendentals = B * S * (num_heads * S + hidden + 2)   # exp + erf + rsqrt
    bytes_accessed = (
        2 * 4 * B * S * E                                   # x in + out (f32)
        + 2 * (E * QKV + E * E + 2 * E * hidden)            # bf16 weights
        + 4 * (QKV + 6 * E + hidden)                        # f32 biases / LN params
    )

    # Derive the VMEM budget per generation instead of hardcoding it.
    try:
        vmem_cap = int(pltpu.get_tpu_info().vmem_capacity_bytes)
    except Exception:  # conservative fallback (v7x-sized)
        vmem_cap = 64 * 1024 * 1024
    vmem_limit = min(vmem_cap * 3 // 4, 112 * 1024 * 1024)

    out = pl.pallas_call(
        kernel,
        out_shape=jax.ShapeDtypeStruct((B, S, E), x.dtype),
        grid_spec=pltpu.PrefetchScalarGridSpec(
            num_scalar_prefetch=0,
            grid=grid,
            in_specs=[
                pl.BlockSpec((bt, S, E), lambda b: (b, 0, 0)),  # x (batch tile)
                wspec((E, QKV)), wspec((1, QKV)),               # fused Wqkv, bqkv
                wspec((E, E)), wspec((1, E)),                   # Wo, bo
                wspec((1, E)), wspec((1, E)),                   # ln1 gamma / beta
                wspec((1, E)), wspec((1, E)),                   # ln2 gamma / beta
                wspec((E, hidden)), wspec((1, hidden)),         # W1, b1
                wspec((hidden, E)), wspec((1, E)),              # W2, b2
            ],
            out_specs=pl.BlockSpec((bt, S, E), lambda b: (b, 0, 0)),
        ),
        compiler_params=pltpu.CompilerParams(
            dimension_semantics=("parallel",),
            vmem_limit_bytes=int(vmem_limit),
        ),
        cost_estimate=pl.CostEstimate(
            flops=int(flops),
            transcendentals=int(transcendentals),
            bytes_accessed=int(bytes_accessed),
        ),
    )(
        xb,
        operands["wqkv"], operands["bqkv"], operands["wo"], operands["bo"],
        operands["g1"], operands["be1"], operands["g2"], operands["be2"],
        operands["w1"], operands["b1"], operands["w2"], operands["b2"],
    )
    return jnp.transpose(out, (1, 0, 2))            # back to (S, B, E)


def init_params(key, embed_dim, mlp_ratio=4.0):
    """Raw f32 params; projection weights stored pre-transposed as (in, out)."""
    hidden = int(embed_dim * mlp_ratio)
    ks = jax.random.split(key, 6)
    std = 0.02
    return {
        "wq": jax.random.normal(ks[0], (embed_dim, embed_dim), jnp.float32) * std,
        "wk": jax.random.normal(ks[1], (embed_dim, embed_dim), jnp.float32) * std,
        "wv": jax.random.normal(ks[2], (embed_dim, embed_dim), jnp.float32) * std,
        "bq": jnp.zeros((1, embed_dim), jnp.float32),
        "bk": jnp.zeros((1, embed_dim), jnp.float32),
        "bv": jnp.zeros((1, embed_dim), jnp.float32),
        "wo": jax.random.normal(ks[3], (embed_dim, embed_dim), jnp.float32) * std,
        "bo": jnp.zeros((1, embed_dim), jnp.float32),
        "g1": jnp.ones((1, embed_dim), jnp.float32),
        "be1": jnp.zeros((1, embed_dim), jnp.float32),
        "g2": jnp.ones((1, embed_dim), jnp.float32),
        "be2": jnp.zeros((1, embed_dim), jnp.float32),
        "w1": jax.random.normal(ks[4], (embed_dim, hidden), jnp.float32) * std,
        "b1": jnp.zeros((1, hidden), jnp.float32),
        "w2": jax.random.normal(ks[5], (hidden, embed_dim), jnp.float32) * std,
        "b2": jnp.zeros((1, embed_dim), jnp.float32),
    }


def prep_operands(params, num_heads):
    """Fuse QKV, fold the 1/sqrt(head_dim) scale into Q, cast weights to bf16."""
    E = params["wq"].shape[0]
    Dh = E // num_heads
    scale = 1.0 / math.sqrt(Dh)                     # torch scales Q by head_dim**-0.5
    wqkv = jnp.concatenate(
        [params["wq"] * scale, params["wk"], params["wv"]], axis=1
    ).astype(jnp.bfloat16)                          # (E, 3E)
    bqkv = jnp.concatenate(
        [params["bq"] * scale, params["bk"], params["bv"]], axis=1)  # (1, 3E) f32
    return {
        "wqkv": wqkv, "bqkv": bqkv,
        "wo": params["wo"].astype(jnp.bfloat16), "bo": params["bo"],
        "g1": params["g1"], "be1": params["be1"],
        "g2": params["g2"], "be2": params["be2"],
        "w1": params["w1"].astype(jnp.bfloat16), "b1": params["b1"],
        "w2": params["w2"].astype(jnp.bfloat16), "b2": params["b2"],
    }


def transformer_block_reference(x, params, num_heads):
    """Pure-JAX f32 reference matching the PyTorch module (eval mode)."""
    S, B, E = x.shape
    H = num_heads
    Dh = E // H

    def ln(v, g, b):
        mu = v.mean(-1, keepdims=True)
        var = ((v - mu) ** 2).mean(-1, keepdims=True)
        return (v - mu) / jnp.sqrt(var + EPS) * g + b

    h = ln(x, params["g1"][0], params["be1"][0])
    q = h @ params["wq"] + params["bq"][0]
    k = h @ params["wk"] + params["bk"][0]
    v = h @ params["wv"] + params["bv"][0]
    qh = q.reshape(S, B, H, Dh).transpose(1, 2, 0, 3)   # (B, H, S, Dh)
    kh = k.reshape(S, B, H, Dh).transpose(1, 2, 0, 3)
    vh = v.reshape(S, B, H, Dh).transpose(1, 2, 0, 3)
    s = jnp.einsum("bhqd,bhkd->bhqk", qh, kh) / math.sqrt(Dh)
    p = jax.nn.softmax(s, axis=-1)
    o = jnp.einsum("bhqk,bhkd->bhqd", p, vh)
    o = o.transpose(2, 0, 1, 3).reshape(S, B, E)
    attn = o @ params["wo"] + params["bo"][0]
    x1 = x + attn
    h2 = ln(x1, params["g2"][0], params["be2"][0])
    m = h2 @ params["w1"] + params["b1"][0]
    m = 0.5 * m * (1.0 + lax.erf(m / jnp.sqrt(2.0)))
    y = m @ params["w2"] + params["b2"][0]
    return x1 + y


if __name__ == "__main__":
    SEQ, BATCH, EMBED, HEADS = 8, 2, 32, 4
    MLP_RATIO = 4.0
    assert EMBED % HEADS == 0

    key = jax.random.PRNGKey(0)
    k_x, k_p = jax.random.split(key)
    x = jax.random.normal(k_x, (SEQ, BATCH, EMBED), jnp.float32)
    params = init_params(k_p, EMBED, mlp_ratio=MLP_RATIO)

    head_dim = EMBED // HEADS
    hidden = int(EMBED * MLP_RATIO)
    operands = prep_operands(params, HEADS)

    out = transformer_block(x, operands, HEADS, head_dim, hidden)
    out = jax.block_until_ready(out)
    assert out.shape == (SEQ, BATCH, EMBED)
    assert jnp.all(jnp.isfinite(out))

    # bf16 matmuls + approx reciprocal vs. f32 reference: loose tolerance gate.
    ref = transformer_block_reference(x, params, HEADS)
    max_err = float(jnp.max(jnp.abs(out - ref)))
    assert jnp.allclose(out, ref, atol=3e-2, rtol=3e-2), max_err

    print("KERNEL_OK")
</pallas_src>

<mosaic_0001>
module attributes {stable_mosaic.version = 11 : i64} {
  func.func @transformer_block_kernel(%arg0: i32, %arg1: memref<2x8x32xf32, #tpu.memory_space<vmem>>, %arg2: memref<32x96xbf16, #tpu.memory_space<vmem>>, %arg3: memref<1x96xf32, #tpu.memory_space<vmem>>, %arg4: memref<32x32xbf16, #tpu.memory_space<vmem>>, %arg5: memref<1x32xf32, #tpu.memory_space<vmem>>, %arg6: memref<1x32xf32, #tpu.memory_space<vmem>>, %arg7: memref<1x32xf32, #tpu.memory_space<vmem>>, %arg8: memref<1x32xf32, #tpu.memory_space<vmem>>, %arg9: memref<1x32xf32, #tpu.memory_space<vmem>>, %arg10: memref<32x128xbf16, #tpu.memory_space<vmem>>, %arg11: memref<1x128xf32, #tpu.memory_space<vmem>>, %arg12: memref<128x32xbf16, #tpu.memory_space<vmem>>, %arg13: memref<1x32xf32, #tpu.memory_space<vmem>>, %arg14: memref<2x8x32xf32, #tpu.memory_space<vmem>>) attributes {dimension_semantics = [#tpu.dimension_semantics<parallel>], iteration_bounds = array<i64: 1>, scalar_prefetch = 0 : i64, scratch_operands = 0 : i64, tpu.core_type = #tpu.core_type<tc>, window_params = [{transform_indices = @transform_0, window_bounds = array<i64: 2, 8, 32>}, {pipeline_mode = #tpu.pipeline_mode<synchronous>, transform_indices = @transform_1, window_bounds = array<i64: 32, 96>}, {pipeline_mode = #tpu.pipeline_mode<synchronous>, transform_indices = @transform_2, window_bounds = array<i64: 1, 96>}, {pipeline_mode = #tpu.pipeline_mode<synchronous>, transform_indices = @transform_3, window_bounds = array<i64: 32, 32>}, {pipeline_mode = #tpu.pipeline_mode<synchronous>, transform_indices = @transform_4, window_bounds = array<i64: 1, 32>}, {pipeline_mode = #tpu.pipeline_mode<synchronous>, transform_indices = @transform_5, window_bounds = array<i64: 1, 32>}, {pipeline_mode = #tpu.pipeline_mode<synchronous>, transform_indices = @transform_6, window_bounds = array<i64: 1, 32>}, {pipeline_mode = #tpu.pipeline_mode<synchronous>, transform_indices = @transform_7, window_bounds = array<i64: 1, 32>}, {pipeline_mode = #tpu.pipeline_mode<synchronous>, transform_indices = @transform_8, window_bounds = array<i64: 1, 32>}, {pipeline_mode = #tpu.pipeline_mode<synchronous>, transform_indices = @transform_9, window_bounds = array<i64: 32, 128>}, {pipeline_mode = #tpu.pipeline_mode<synchronous>, transform_indices = @transform_10, window_bounds = array<i64: 1, 128>}, {pipeline_mode = #tpu.pipeline_mode<synchronous>, transform_indices = @transform_11, window_bounds = array<i64: 128, 32>}, {pipeline_mode = #tpu.pipeline_mode<synchronous>, transform_indices = @transform_12, window_bounds = array<i64: 1, 32>}, {transform_indices = @transform_13, window_bounds = array<i64: 2, 8, 32>}]} {
    %c0 = arith.constant 0 : index
    %c0_0 = arith.constant 0 : index
    %c0_1 = arith.constant 0 : index
    %0 = vector.load %arg1[%c0, %c0_0, %c0_1] : memref<2x8x32xf32, #tpu.memory_space<vmem>>, vector<2x8x32xf32>
    %1 = vector.shape_cast %0 : vector<2x8x32xf32> to vector<16x32xf32>
    %c0_2 = arith.constant 0 : index
    %c0_3 = arith.constant 0 : index
    %2 = vector.load %arg6[%c0_2, %c0_3] : memref<1x32xf32, #tpu.memory_space<vmem>>, vector<1x32xf32>
    %c0_4 = arith.constant 0 : index
    %c0_5 = arith.constant 0 : index
    %3 = vector.load %arg7[%c0_4, %c0_5] : memref<1x32xf32, #tpu.memory_space<vmem>>, vector<1x32xf32>
    %cst = arith.constant dense<0.000000e+00> : vector<16xf32>
    %4 = vector.multi_reduction <add>, %1, %cst [1] : vector<16x32xf32> to vector<16xf32>
    %5 = vector.shape_cast %4 : vector<16xf32> to vector<16x1xf32>
    %cst_6 = arith.constant 3.200000e+01 : f32
    %6 = vector.broadcast %cst_6 : f32 to vector<16x1xf32>
    %7 = arith.divf %5, %6 : vector<16x1xf32>
    %8 = vector.broadcast %7 : vector<16x1xf32> to vector<16x32xf32>
    %9 = arith.subf %1, %8 : vector<16x32xf32>
    %10 = arith.mulf %9, %9 : vector<16x32xf32>
    %cst_7 = arith.constant dense<0.000000e+00> : vector<16xf32>
    %11 = vector.multi_reduction <add>, %10, %cst_7 [1] : vector<16x32xf32> to vector<16xf32>
    %12 = vector.shape_cast %11 : vector<16xf32> to vector<16x1xf32>
    %cst_8 = arith.constant 3.200000e+01 : f32
    %13 = vector.broadcast %cst_8 : f32 to vector<16x1xf32>
    %14 = arith.divf %12, %13 : vector<16x1xf32>
    %15 = vector.broadcast %7 : vector<16x1xf32> to vector<16x32xf32>
    %16 = arith.subf %1, %15 : vector<16x32xf32>
    %cst_9 = arith.constant 9.99999974E-6 : f32
    %17 = vector.broadcast %cst_9 : f32 to vector<16x1xf32>
    %18 = arith.addf %14, %17 : vector<16x1xf32>
    %19 = math.rsqrt %18 : vector<16x1xf32>
    %20 = vector.broadcast %19 : vector<16x1xf32> to vector<16x32xf32>
    %21 = arith.mulf %16, %20 : vector<16x32xf32>
    %22 = vector.broadcast %2 : vector<1x32xf32> to vector<16x32xf32>
    %23 = arith.mulf %21, %22 : vector<16x32xf32>
    %24 = vector.broadcast %3 : vector<1x32xf32> to vector<16x32xf32>
    %25 = arith.addf %23, %24 : vector<16x32xf32>
    %26 = arith.truncf %25 : vector<16x32xf32> to vector<16x32xbf16>
    %c0_10 = arith.constant 0 : index
    %c0_11 = arith.constant 0 : index
    %27 = vector.load %arg2[%c0_10, %c0_11] : memref<32x96xbf16, #tpu.memory_space<vmem>>, vector<32x96xbf16>
    %cst_12 = arith.constant dense<0.000000e+00> : vector<16x96xf32>
    %28 = tpu.matmul %26, %27, %cst_12 {dimension_numbers = #tpu.dot_dimension_numbers<[1], [0], [0], [1], [0, 0, 1, 1], [], []>} : vector<16x32xbf16>, vector<32x96xbf16>, vector<16x96xf32> -> vector<16x96xf32>
    %c0_13 = arith.constant 0 : index
    %c0_14 = arith.constant 0 : index
    %29 = vector.load %arg3[%c0_13, %c0_14] : memref<1x96xf32, #tpu.memory_space<vmem>>, vector<1x96xf32>
    %30 = vector.broadcast %29 : vector<1x96xf32> to vector<16x96xf32>
    %31 = arith.addf %28, %30 : vector<16x96xf32>
    %32 = arith.truncf %31 : vector<16x96xf32> to vector<16x96xbf16>
    %33 = vector.extract_strided_slice %32 {offsets = [0, 0], sizes = [8, 8], strides = [1, 1]} : vector<16x96xbf16> to vector<8x8xbf16>
    %34 = vector.extract_strided_slice %32 {offsets = [0, 32], sizes = [8, 8], strides = [1, 1]} : vector<16x96xbf16> to vector<8x8xbf16>
    %35 = vector.extract_strided_slice %32 {offsets = [0, 64], sizes = [8, 8], strides = [1, 1]} : vector<16x96xbf16> to vector<8x8xbf16>
    %cst_15 = arith.constant dense<0.000000e+00> : vector<8x8xf32>
    %36 = tpu.matmul %33, %34, %cst_15 {dimension_numbers = #tpu.dot_dimension_numbers<[1], [1], [0], [0], [0, 0, 1, 0], [], []>} : vector<8x8xbf16>, vector<8x8xbf16>, vector<8x8xf32> -> vector<8x8xf32>
    %cst_16 = arith.constant dense<0xFF800000> : vector<8xf32>
    %37 = vector.multi_reduction <maximumf>, %36, %cst_16 [1] : vector<8x8xf32> to vector<8xf32>
    %38 = vector.shape_cast %37 : vector<8xf32> to vector<8x1xf32>
    %39 = vector.broadcast %38 : vector<8x1xf32> to vector<8x8xf32>
    %40 = arith.subf %36, %39 : vector<8x8xf32>
    %41 = math.exp %40 : vector<8x8xf32>
    %cst_17 = arith.constant dense<0.000000e+00> : vector<8xf32>
    %42 = vector.multi_reduction <add>, %41, %cst_17 [1] : vector<8x8xf32> to vector<8xf32>
    %43 = vector.shape_cast %42 : vector<8xf32> to vector<8x1xf32>
    %44 = tpu.reciprocal %43 {approx = true} : vector<8x1xf32> -> vector<8x1xf32>
    %45 = vector.broadcast %44 : vector<8x1xf32> to vector<8x8xf32>
    %46 = arith.mulf %41, %45 : vector<8x8xf32>
    %47 = arith.truncf %46 : vector<8x8xf32> to vector<8x8xbf16>
    %cst_18 = arith.constant dense<0.000000e+00> : vector<8x8xf32>
    %48 = tpu.matmul %47, %35, %cst_18 {dimension_numbers = #tpu.dot_dimension_numbers<[1], [0], [0], [1], [0, 0, 1, 1], [], []>} : vector<8x8xbf16>, vector<8x8xbf16>, vector<8x8xf32> -> vector<8x8xf32>
    %49 = vector.extract_strided_slice %32 {offsets = [8, 0], sizes = [8, 8], strides = [1, 1]} : vector<16x96xbf16> to vector<8x8xbf16>
    %50 = vector.extract_strided_slice %32 {offsets = [8, 32], sizes = [8, 8], strides = [1, 1]} : vector<16x96xbf16> to vector<8x8xbf16>
    %51 = vector.extract_strided_slice %32 {offsets = [8, 64], sizes = [8, 8], strides = [1, 1]} : vector<16x96xbf16> to vector<8x8xbf16>
    %cst_19 = arith.constant dense<0.000000e+00> : vector<8x8xf32>
    %52 = tpu.matmul %49, %50, %cst_19 {dimension_numbers = #tpu.dot_dimension_numbers<[1], [1], [0], [0], [0, 0, 1, 0], [], []>} : vector<8x8xbf16>, vector<8x8xbf16>, vector<8x8xf32> -> vector<8x8xf32>
    %cst_20 = arith.constant dense<0xFF800000> : vector<8xf32>
    %53 = vector.multi_reduction <maximumf>, %52, %cst_20 [1] : vector<8x8xf32> to vector<8xf32>
    %54 = vector.shape_cast %53 : vector<8xf32> to vector<8x1xf32>
    %55 = vector.broadcast %54 : vector<8x1xf32> to vector<8x8xf32>
    %56 = arith.subf %52, %55 : vector<8x8xf32>
    %57 = math.exp %56 : vector<8x8xf32>
    %cst_21 = arith.constant dense<0.000000e+00> : vector<8xf32>
    %58 = vector.multi_reduction <add>, %57, %cst_21 [1] : vector<8x8xf32> to vector<8xf32>
    %59 = vector.shape_cast %58 : vector<8xf32> to vector<8x1xf32>
    %60 = tpu.reciprocal %59 {approx = true} : vector<8x1xf32> -> vector<8x1xf32>
    %61 = vector.broadcast %60 : vector<8x1xf32> to vector<8x8xf32>
    %62 = arith.mulf %57, %61 : vector<8x8xf32>
    %63 = arith.truncf %62 : vector<8x8xf32> to vector<8x8xbf16>
    %cst_22 = arith.constant dense<0.000000e+00> : vector<8x8xf32>
    %64 = tpu.matmul %63, %51, %cst_22 {dimension_numbers = #tpu.dot_dimension_numbers<[1], [0], [0], [1], [0, 0, 1, 1], [], []>} : vector<8x8xbf16>, vector<8x8xbf16>, vector<8x8xf32> -> vector<8x8xf32>
    %65 = tpu.concatenate %48, %64 in 0 : vector<8x8xf32>, vector<8x8xf32> -> vector<16x8xf32>
    %66 = vector.extract_strided_slice %32 {offsets = [0, 8], sizes = [8, 8], strides = [1, 1]} : vector<16x96xbf16> to vector<8x8xbf16>
    %67 = vector.extract_strided_slice %32 {offsets = [0, 40], sizes = [8, 8], strides = [1, 1]} : vector<16x96xbf16> to vector<8x8xbf16>
    %68 = vector.extract_strided_slice %32 {offsets = [0, 72], sizes = [8, 8], strides = [1, 1]} : vector<16x96xbf16> to vector<8x8xbf16>
    %cst_23 = arith.constant dense<0.000000e+00> : vector<8x8xf32>
    %69 = tpu.matmul %66, %67, %cst_23 {dimension_numbers = #tpu.dot_dimension_numbers<[1], [1], [0], [0], [0, 0, 1, 0], [], []>} : vector<8x8xbf16>, vector<8x8xbf16>, vector<8x8xf32> -> vector<8x8xf32>
    %cst_24 = arith.constant dense<0xFF800000> : vector<8xf32>
    %70 = vector.multi_reduction <maximumf>, %69, %cst_24 [1] : vector<8x8xf32> to vector<8xf32>
    %71 = vector.shape_cast %70 : vector<8xf32> to vector<8x1xf32>
    %72 = vector.broadcast %71 : vector<8x1xf32> to vector<8x8xf32>
    %73 = arith.subf %69, %72 : vector<8x8xf32>
    %74 = math.exp %73 : vector<8x8xf32>
    %cst_25 = arith.constant dense<0.000000e+00> : vector<8xf32>
    %75 = vector.multi_reduction <add>, %74, %cst_25 [1] : vector<8x8xf32> to vector<8xf32>
    %76 = vector.shape_cast %75 : vector<8xf32> to vector<8x1xf32>
    %77 = tpu.reciprocal %76 {approx = true} : vector<8x1xf32> -> vector<8x1xf32>
    %78 = vector.broadcast %77 : vector<8x1xf32> to vector<8x8xf32>
    %79 = arith.mulf %74, %78 : vector<8x8xf32>
    %80 = arith.truncf %79 : vector<8x8xf32> to vector<8x8xbf16>
    %cst_26 = arith.constant dense<0.000000e+00> : vector<8x8xf32>
    %81 = tpu.matmul %80, %68, %cst_26 {dimension_numbers = #tpu.dot_dimension_numbers<[1], [0], [0], [1], [0, 0, 1, 1], [], []>} : vector<8x8xbf16>, vector<8x8xbf16>, vector<8x8xf32> -> vector<8x8xf32>
    %82 = vector.extract_strided_slice %32 {offsets = [8, 8], sizes = [8, 8], strides = [1, 1]} : vector<16x96xbf16> to vector<8x8xbf16>
    %83 = vector.extract_strided_slice %32 {offsets = [8, 40], sizes = [8, 8], strides = [1, 1]} : vector<16x96xbf16> to vector<8x8xbf16>
    %84 = vector.extract_strided_slice %32 {offsets = [8, 72], sizes = [8, 8], strides = [1, 1]} : vector<16x96xbf16> to vector<8x8xbf16>
    %cst_27 = arith.constant dense<0.000000e+00> : vector<8x8xf32>
    %85 = tpu.matmul %82, %83, %cst_27 {dimension_numbers = #tpu.dot_dimension_numbers<[1], [1], [0], [0], [0, 0, 1, 0], [], []>} : vector<8x8xbf16>, vector<8x8xbf16>, vector<8x8xf32> -> vector<8x8xf32>
    %cst_28 = arith.constant dense<0xFF800000> : vector<8xf32>
    %86 = vector.multi_reduction <maximumf>, %85, %cst_28 [1] : vector<8x8xf32> to vector<8xf32>
    %87 = vector.shape_cast %86 : vector<8xf32> to vector<8x1xf32>
    %88 = vector.broadcast %87 : vector<8x1xf32> to vector<8x8xf32>
    %89 = arith.subf %85, %88 : vector<8x8xf32>
    %90 = math.exp %89 : vector<8x8xf32>
    %cst_29 = arith.constant dense<0.000000e+00> : vector<8xf32>
    %91 = vector.multi_reduction <add>, %90, %cst_29 [1] : vector<8x8xf32> to vector<8xf32>
    %92 = vector.shape_cast %91 : vector<8xf32> to vector<8x1xf32>
    %93 = tpu.reciprocal %92 {approx = true} : vector<8x1xf32> -> vector<8x1xf32>
    %94 = vector.broadcast %93 : vector<8x1xf32> to vector<8x8xf32>
    %95 = arith.mulf %90, %94 : vector<8x8xf32>
    %96 = arith.truncf %95 : vector<8x8xf32> to vector<8x8xbf16>
    %cst_30 = arith.constant dense<0.000000e+00> : vector<8x8xf32>
    %97 = tpu.matmul %96, %84, %cst_30 {dimension_numbers = #tpu.dot_dimension_numbers<[1], [0], [0], [1], [0, 0, 1, 1], [], []>} : vector<8x8xbf16>, vector<8x8xbf16>, vector<8x8xf32> -> vector<8x8xf32>
    %98 = tpu.concatenate %81, %97 in 0 : vector<8x8xf32>, vector<8x8xf32> -> vector<16x8xf32>
    %99 = vector.extract_strided_slice %32 {offsets = [0, 16], sizes = [8, 8], strides = [1, 1]} : vector<16x96xbf16> to vector<8x8xbf16>
    %100 = vector.extract_strided_slice %32 {offsets = [0, 48], sizes = [8, 8], strides = [1, 1]} : vector<16x96xbf16> to vector<8x8xbf16>
    %101 = vector.extract_strided_slice %32 {offsets = [0, 80], sizes = [8, 8], strides = [1, 1]} : vector<16x96xbf16> to vector<8x8xbf16>
    %cst_31 = arith.constant dense<0.000000e+00> : vector<8x8xf32>
    %102 = tpu.matmul %99, %100, %cst_31 {dimension_numbers = #tpu.dot_dimension_numbers<[1], [1], [0], [0], [0, 0, 1, 0], [], []>} : vector<8x8xbf16>, vector<8x8xbf16>, vector<8x8xf32> -> vector<8x8xf32>
    %cst_32 = arith.constant dense<0xFF800000> : vector<8xf32>
    %103 = vector.multi_reduction <maximumf>, %102, %cst_32 [1] : vector<8x8xf32> to vector<8xf32>
    %104 = vector.shape_cast %103 : vector<8xf32> to vector<8x1xf32>
    %105 = vector.broadcast %104 : vector<8x1xf32> to vector<8x8xf32>
    %106 = arith.subf %102, %105 : vector<8x8xf32>
    %107 = math.exp %106 : vector<8x8xf32>
    %cst_33 = arith.constant dense<0.000000e+00> : vector<8xf32>
    %108 = vector.multi_reduction <add>, %107, %cst_33 [1] : vector<8x8xf32> to vector<8xf32>
    %109 = vector.shape_cast %108 : vector<8xf32> to vector<8x1xf32>
    %110 = tpu.reciprocal %109 {approx = true} : vector<8x1xf32> -> vector<8x1xf32>
    %111 = vector.broadcast %110 : vector<8x1xf32> to vector<8x8xf32>
    %112 = arith.mulf %107, %111 : vector<8x8xf32>
    %113 = arith.truncf %112 : vector<8x8xf32> to vector<8x8xbf16>
    %cst_34 = arith.constant dense<0.000000e+00> : vector<8x8xf32>
    %114 = tpu.matmul %113, %101, %cst_34 {dimension_numbers = #tpu.dot_dimension_numbers<[1], [0], [0], [1], [0, 0, 1, 1], [], []>} : vector<8x8xbf16>, vector<8x8xbf16>, vector<8x8xf32> -> vector<8x8xf32>
    %115 = vector.extract_strided_slice %32 {offsets = [8, 16], sizes = [8, 8], strides = [1, 1]} : vector<16x96xbf16> to vector<8x8xbf16>
    %116 = vector.extract_strided_slice %32 {offsets = [8, 48], sizes = [8, 8], strides = [1, 1]} : vector<16x96xbf16> to vector<8x8xbf16>
    %117 = vector.extract_strided_slice %32 {offsets = [8, 80], sizes = [8, 8], strides = [1, 1]} : vector<16x96xbf16> to vector<8x8xbf16>
    %cst_35 = arith.constant dense<0.000000e+00> : vector<8x8xf32>
    %118 = tpu.matmul %115, %116, %cst_35 {dimension_numbers = #tpu.dot_dimension_numbers<[1], [1], [0], [0], [0, 0, 1, 0], [], []>} : vector<8x8xbf16>, vector<8x8xbf16>, vector<8x8xf32> -> vector<8x8xf32>
    %cst_36 = arith.constant dense<0xFF800000> : vector<8xf32>
    %119 = vector.multi_reduction <maximumf>, %118, %cst_36 [1] : vector<8x8xf32> to vector<8xf32>
    %120 = vector.shape_cast %119 : vector<8xf32> to vector<8x1xf32>
    %121 = vector.broadcast %120 : vector<8x1xf32> to vector<8x8xf32>
    %122 = arith.subf %118, %121 : vector<8x8xf32>
    %123 = math.exp %122 : vector<8x8xf32>
    %cst_37 = arith.constant dense<0.000000e+00> : vector<8xf32>
    %124 = vector.multi_reduction <add>, %123, %cst_37 [1] : vector<8x8xf32> to vector<8xf32>
    %125 = vector.shape_cast %124 : vector<8xf32> to vector<8x1xf32>
    %126 = tpu.reciprocal %125 {approx = true} : vector<8x1xf32> -> vector<8x1xf32>
    %127 = vector.broadcast %126 : vector<8x1xf32> to vector<8x8xf32>
    %128 = arith.mulf %123, %127 : vector<8x8xf32>
    %129 = arith.truncf %128 : vector<8x8xf32> to vector<8x8xbf16>
    %cst_38 = arith.constant dense<0.000000e+00> : vector<8x8xf32>
    %130 = tpu.matmul %129, %117, %cst_38 {dimension_numbers = #tpu.dot_dimension_numbers<[1], [0], [0], [1], [0, 0, 1, 1], [], []>} : vector<8x8xbf16>, vector<8x8xbf16>, vector<8x8xf32> -> vector<8x8xf32>
    %131 = tpu.concatenate %114, %130 in 0 : vector<8x8xf32>, vector<8x8xf32> -> vector<16x8xf32>
    %132 = vector.extract_strided_slice %32 {offsets = [0, 24], sizes = [8, 8], strides = [1, 1]} : vector<16x96xbf16> to vector<8x8xbf16>
    %133 = vector.extract_strided_slice %32 {offsets = [0, 56], sizes = [8, 8], strides = [1, 1]} : vector<16x96xbf16> to vector<8x8xbf16>
    %134 = vector.extract_strided_slice %32 {offsets = [0, 88], sizes = [8, 8], strides = [1, 1]} : vector<16x96xbf16> to vector<8x8xbf16>
    %cst_39 = arith.constant dense<0.000000e+00> : vector<8x8xf32>
    %135 = tpu.matmul %132, %133, %cst_39 {dimension_numbers = #tpu.dot_dimension_numbers<[1], [1], [0], [0], [0, 0, 1, 0], [], []>} : vector<8x8xbf16>, vector<8x8xbf16>, vector<8x8xf32> -> vector<8x8xf32>
    %cst_40 = arith.constant dense<0xFF800000> : vector<8xf32>
    %136 = vector.multi_reduction <maximumf>, %135, %cst_40 [1] : vector<8x8xf32> to vector<8xf32>
    %137 = vector.shape_cast %136 : vector<8xf32> to vector<8x1xf32>
    %138 = vector.broadcast %137 : vector<8x1xf32> to vector<8x8xf32>
    %139 = arith.subf %135, %138 : vector<8x8xf32>
    %140 = math.exp %139 : vector<8x8xf32>
    %cst_41 = arith.constant dense<0.000000e+00> : vector<8xf32>
    %141 = vector.multi_reduction <add>, %140, %cst_41 [1] : vector<8x8xf32> to vector<8xf32>
    %142 = vector.shape_cast %141 : vector<8xf32> to vector<8x1xf32>
    %143 = tpu.reciprocal %142 {approx = true} : vector<8x1xf32> -> vector<8x1xf32>
    %144 = vector.broadcast %143 : vector<8x1xf32> to vector<8x8xf32>
    %145 = arith.mulf %140, %144 : vector<8x8xf32>
    %146 = arith.truncf %145 : vector<8x8xf32> to vector<8x8xbf16>
    %cst_42 = arith.constant dense<0.000000e+00> : vector<8x8xf32>
    %147 = tpu.matmul %146, %134, %cst_42 {dimension_numbers = #tpu.dot_dimension_numbers<[1], [0], [0], [1], [0, 0, 1, 1], [], []>} : vector<8x8xbf16>, vector<8x8xbf16>, vector<8x8xf32> -> vector<8x8xf32>
    %148 = vector.extract_strided_slice %32 {offsets = [8, 24], sizes = [8, 8], strides = [1, 1]} : vector<16x96xbf16> to vector<8x8xbf16>
    %149 = vector.extract_strided_slice %32 {offsets = [8, 56], sizes = [8, 8], strides = [1, 1]} : vector<16x96xbf16> to vector<8x8xbf16>
    %150 = vector.extract_strided_slice %32 {offsets = [8, 88], sizes = [8, 8], strides = [1, 1]} : vector<16x96xbf16> to vector<8x8xbf16>
    %cst_43 = arith.constant dense<0.000000e+00> : vector<8x8xf32>
    %151 = tpu.matmul %148, %149, %cst_43 {dimension_numbers = #tpu.dot_dimension_numbers<[1], [1], [0], [0], [0, 0, 1, 0], [], []>} : vector<8x8xbf16>, vector<8x8xbf16>, vector<8x8xf32> -> vector<8x8xf32>
    %cst_44 = arith.constant dense<0xFF800000> : vector<8xf32>
    %152 = vector.multi_reduction <maximumf>, %151, %cst_44 [1] : vector<8x8xf32> to vector<8xf32>
    %153 = vector.shape_cast %152 : vector<8xf32> to vector<8x1xf32>
    %154 = vector.broadcast %153 : vector<8x1xf32> to vector<8x8xf32>
    %155 = arith.subf %151, %154 : vector<8x8xf32>
    %156 = math.exp %155 : vector<8x8xf32>
    %cst_45 = arith.constant dense<0.000000e+00> : vector<8xf32>
    %157 = vector.multi_reduction <add>, %156, %cst_45 [1] : vector<8x8xf32> to vector<8xf32>
    %158 = vector.shape_cast %157 : vector<8xf32> to vector<8x1xf32>
    %159 = tpu.reciprocal %158 {approx = true} : vector<8x1xf32> -> vector<8x1xf32>
    %160 = vector.broadcast %159 : vector<8x1xf32> to vector<8x8xf32>
    %161 = arith.mulf %156, %160 : vector<8x8xf32>
    %162 = arith.truncf %161 : vector<8x8xf32> to vector<8x8xbf16>
    %cst_46 = arith.constant dense<0.000000e+00> : vector<8x8xf32>
    %163 = tpu.matmul %162, %150, %cst_46 {dimension_numbers = #tpu.dot_dimension_numbers<[1], [0], [0], [1], [0, 0, 1, 1], [], []>} : vector<8x8xbf16>, vector<8x8xbf16>, vector<8x8xf32> -> vector<8x8xf32>
    %164 = tpu.concatenate %147, %163 in 0 : vector<8x8xf32>, vector<8x8xf32> -> vector<16x8xf32>
    %165 = tpu.concatenate %65, %98, %131, %164 in 1 : vector<16x8xf32>, vector<16x8xf32>, vector<16x8xf32>, vector<16x8xf32> -> vector<16x32xf32>
    %166 = arith.truncf %165 : vector<16x32xf32> to vector<16x32xbf16>
    %c0_47 = arith.constant 0 : index
    %c0_48 = arith.constant 0 : index
    %167 = vector.load %arg4[%c0_47, %c0_48] : memref<32x32xbf16, #tpu.memory_space<vmem>>, vector<32x32xbf16>
    %cst_49 = arith.constant dense<0.000000e+00> : vector<16x32xf32>
    %168 = tpu.matmul %166, %167, %cst_49 {dimension_numbers = #tpu.dot_dimension_numbers<[1], [0], [0], [1], [0, 0, 1, 1], [], []>} : vector<16x32xbf16>, vector<32x32xbf16>, vector<16x32xf32> -> vector<16x32xf32>
    %c0_50 = arith.constant 0 : index
    %c0_51 = arith.constant 0 : index
    %169 = vector.load %arg5[%c0_50, %c0_51] : memref<1x32xf32, #tpu.memory_space<vmem>>, vector<1x32xf32>
    %170 = vector.broadcast %169 : vector<1x32xf32> to vector<16x32xf32>
    %171 = arith.addf %168, %170 : vector<16x32xf32>
    %172 = arith.addf %1, %171 : vector<16x32xf32>
    %c0_52 = arith.constant 0 : index
    %c0_53 = arith.constant 0 : index
    %173 = vector.load %arg8[%c0_52, %c0_53] : memref<1x32xf32, #tpu.memory_space<vmem>>, vector<1x32xf32>
    %c0_54 = arith.constant 0 : index
    %c0_55 = arith.constant 0 : index
    %174 = vector.load %arg9[%c0_54, %c0_55] : memref<1x32xf32, #tpu.memory_space<vmem>>, vector<1x32xf32>
    %cst_56 = arith.constant dense<0.000000e+00> : vector<16xf32>
    %175 = vector.multi_reduction <add>, %172, %cst_56 [1] : vector<16x32xf32> to vector<16xf32>
    %176 = vector.shape_cast %175 : vector<16xf32> to vector<16x1xf32>
    %cst_57 = arith.constant 3.200000e+01 : f32
    %177 = vector.broadcast %cst_57 : f32 to vector<16x1xf32>
    %178 = arith.divf %176, %177 : vector<16x1xf32>
    %179 = vector.broadcast %178 : vector<16x1xf32> to vector<16x32xf32>
    %180 = arith.subf %172, %179 : vector<16x32xf32>
    %181 = arith.mulf %180, %180 : vector<16x32xf32>
    %cst_58 = arith.constant dense<0.000000e+00> : vector<16xf32>
    %182 = vector.multi_reduction <add>, %181, %cst_58 [1] : vector<16x32xf32> to vector<16xf32>
    %183 = vector.shape_cast %182 : vector<16xf32> to vector<16x1xf32>
    %cst_59 = arith.constant 3.200000e+01 : f32
    %184 = vector.broadcast %cst_59 : f32 to vector<16x1xf32>
    %185 = arith.divf %183, %184 : vector<16x1xf32>
    %186 = vector.broadcast %178 : vector<16x1xf32> to vector<16x32xf32>
    %187 = arith.subf %172, %186 : vector<16x32xf32>
    %cst_60 = arith.constant 9.99999974E-6 : f32
    %188 = vector.broadcast %cst_60 : f32 to vector<16x1xf32>
    %189 = arith.addf %185, %188 : vector<16x1xf32>
    %190 = math.rsqrt %189 : vector<16x1xf32>
    %191 = vector.broadcast %190 : vector<16x1xf32> to vector<16x32xf32>
    %192 = arith.mulf %187, %191 : vector<16x32xf32>
    %193 = vector.broadcast %173 : vector<1x32xf32> to vector<16x32xf32>
    %194 = arith.mulf %192, %193 : vector<16x32xf32>
    %195 = vector.broadcast %174 : vector<1x32xf32> to vector<16x32xf32>
    %196 = arith.addf %194, %195 : vector<16x32xf32>
    %197 = arith.truncf %196 : vector<16x32xf32> to vector<16x32xbf16>
    %c0_61 = arith.constant 0 : index
    %c0_62 = arith.constant 0 : index
    %198 = vector.load %arg10[%c0_61, %c0_62] : memref<32x128xbf16, #tpu.memory_space<vmem>>, vector<32x128xbf16>
    %cst_63 = arith.constant dense<0.000000e+00> : vector<16x128xf32>
    %199 = tpu.matmul %197, %198, %cst_63 {dimension_numbers = #tpu.dot_dimension_numbers<[1], [0], [0], [1], [0, 0, 1, 1], [], []>} : vector<16x32xbf16>, vector<32x128xbf16>, vector<16x128xf32> -> vector<16x128xf32>
    %c0_64 = arith.constant 0 : index
    %c0_65 = arith.constant 0 : index
    %200 = vector.load %arg11[%c0_64, %c0_65] : memref<1x128xf32, #tpu.memory_space<vmem>>, vector<1x128xf32>
    %201 = vector.broadcast %200 : vector<1x128xf32> to vector<16x128xf32>
    %202 = arith.addf %199, %201 : vector<16x128xf32>
    %cst_66 = arith.constant 5.000000e-01 : f32
    %203 = vector.broadcast %cst_66 : f32 to vector<16x128xf32>
    %204 = arith.mulf %203, %202 : vector<16x128xf32>
    %cst_67 = arith.constant 2.000000e+00 : f32
    %205 = math.sqrt %cst_67 : f32
    %206 = vector.broadcast %205 : f32 to vector<16x128xf32>
    %207 = arith.divf %202, %206 : vector<16x128xf32>
    %208 = math.erf %207 : vector<16x128xf32>
    %cst_68 = arith.constant 1.000000e+00 : f32
    %209 = vector.broadcast %cst_68 : f32 to vector<16x128xf32>
    %210 = arith.addf %209, %208 : vector<16x128xf32>
    %211 = arith.mulf %204, %210 : vector<16x128xf32>
    %212 = arith.truncf %211 : vector<16x128xf32> to vector<16x128xbf16>
    %c0_69 = arith.constant 0 : index
    %c0_70 = arith.constant 0 : index
    %213 = vector.load %arg12[%c0_69, %c0_70] : memref<128x32xbf16, #tpu.memory_space<vmem>>, vector<128x32xbf16>
    %cst_71 = arith.constant dense<0.000000e+00> : vector<16x32xf32>
    %214 = tpu.matmul %212, %213, %cst_71 {dimension_numbers = #tpu.dot_dimension_numbers<[1], [0], [0], [1], [0, 0, 1, 1], [], []>} : vector<16x128xbf16>, vector<128x32xbf16>, vector<16x32xf32> -> vector<16x32xf32>
    %c0_72 = arith.constant 0 : index
    %c0_73 = arith.constant 0 : index
    %215 = vector.load %arg13[%c0_72, %c0_73] : memref<1x32xf32, #tpu.memory_space<vmem>>, vector<1x32xf32>
    %216 = vector.broadcast %215 : vector<1x32xf32> to vector<16x32xf32>
    %217 = arith.addf %214, %216 : vector<16x32xf32>
    %218 = arith.addf %172, %217 : vector<16x32xf32>
    %219 = vector.shape_cast %218 : vector<16x32xf32> to vector<2x8x32xf32>
    %c0_74 = arith.constant 0 : index
    %c0_75 = arith.constant 0 : index
    %c0_76 = arith.constant 0 : index
    %220 = vector.load %arg14[%c0_74, %c0_75, %c0_76] : memref<2x8x32xf32, #tpu.memory_space<vmem>>, vector<2x8x32xf32>
    tpu.vector_store %arg14[%c0_74, %c0_75, %c0_76], %219 {strides = array<i32>} : memref<2x8x32xf32, #tpu.memory_space<vmem>>, vector<2x8x32xf32>,
    return
  }
  func.func @transform_0(%arg0: i32) -> (i32, i32, i32) {
    %c0_i32 = arith.constant 0 : i32
    %c0_i32_0 = arith.constant 0 : i32
    %c0_i32_1 = arith.constant 0 : i32
    return %arg0, %c0_i32, %c0_i32_0 : i32, i32, i32
  }
  func.func @transform_1(%arg0: i32) -> (i32, i32) {
    %c0_i32 = arith.constant 0 : i32
    %c0_i32_0 = arith.constant 0 : i32
    %c0_i32_1 = arith.constant 0 : i32
    return %c0_i32, %c0_i32_0 : i32, i32
  }
  func.func @transform_2(%arg0: i32) -> (i32, i32) {
    %c0_i32 = arith.constant 0 : i32
    %c0_i32_0 = arith.constant 0 : i32
    %c0_i32_1 = arith.constant 0 : i32
    return %c0_i32, %c0_i32_0 : i32, i32
  }
  func.func @transform_3(%arg0: i32) -> (i32, i32) {
    %c0_i32 = arith.constant 0 : i32
    %c0_i32_0 = arith.constant 0 : i32
    %c0_i32_1 = arith.constant 0 : i32
    return %c0_i32, %c0_i32_0 : i32, i32
  }
  func.func @transform_4(%arg0: i32) -> (i32, i32) {
    %c0_i32 = arith.constant 0 : i32
    %c0_i32_0 = arith.constant 0 : i32
    %c0_i32_1 = arith.constant 0 : i32
    return %c0_i32, %c0_i32_0 : i32, i32
  }
  func.func @transform_5(%arg0: i32) -> (i32, i32) {
    %c0_i32 = arith.constant 0 : i32
    %c0_i32_0 = arith.constant 0 : i32
    %c0_i32_1 = arith.constant 0 : i32
    return %c0_i32, %c0_i32_0 : i32, i32
  }
  func.func @transform_6(%arg0: i32) -> (i32, i32) {
    %c0_i32 = arith.constant 0 : i32
    %c0_i32_0 = arith.constant 0 : i32
    %c0_i32_1 = arith.constant 0 : i32
    return %c0_i32, %c0_i32_0 : i32, i32
  }
  func.func @transform_7(%arg0: i32) -> (i32, i32) {
    %c0_i32 = arith.constant 0 : i32
    %c0_i32_0 = arith.constant 0 : i32
    %c0_i32_1 = arith.constant 0 : i32
    return %c0_i32, %c0_i32_0 : i32, i32
  }
  func.func @transform_8(%arg0: i32) -> (i32, i32) {
    %c0_i32 = arith.constant 0 : i32
    %c0_i32_0 = arith.constant 0 : i32
    %c0_i32_1 = arith.constant 0 : i32
    return %c0_i32, %c0_i32_0 : i32, i32
  }
  func.func @transform_9(%arg0: i32) -> (i32, i32) {
    %c0_i32 = arith.constant 0 : i32
    %c0_i32_0 = arith.constant 0 : i32
    %c0_i32_1 = arith.constant 0 : i32
    return %c0_i32, %c0_i32_0 : i32, i32
  }
  func.func @transform_10(%arg0: i32) -> (i32, i32) {
    %c0_i32 = arith.constant 0 : i32
    %c0_i32_0 = arith.constant 0 : i32
    %c0_i32_1 = arith.constant 0 : i32
    return %c0_i32, %c0_i32_0 : i32, i32
  }
  func.func @transform_11(%arg0: i32) -> (i32, i32) {
    %c0_i32 = arith.constant 0 : i32
    %c0_i32_0 = arith.constant 0 : i32
    %c0_i32_1 = arith.constant 0 : i32
    return %c0_i32, %c0_i32_0 : i32, i32
  }
  func.func @transform_12(%arg0: i32) -> (i32, i32) {
    %c0_i32 = arith.constant 0 : i32
    %c0_i32_0 = arith.constant 0 : i32
    %c0_i32_1 = arith.constant 0 : i32
    return %c0_i32, %c0_i32_0 : i32, i32
  }
  func.func @transform_13(%arg0: i32) -> (i32, i32, i32) {
    %c0_i32 = arith.constant 0 : i32
    %c0_i32_0 = arith.constant 0 : i32
    %c0_i32_1 = arith.constant 0 : i32
    return %arg0, %c0_i32, %c0_i32_0 : i32, i32, i32
  }
}

</mosaic_0001>

<llo_original>
// kernel: tpu_custom_call.1
$region0: #{tpu_custom_call.1}
  #allocation0 [shape = 'u32[]', space=smem, size = 0x4, offset = 0x4, fixed_abs, tag = 'smem constant byte address 0x4 - core index']
  #allocation1 [shape = 'u32[144,128]{1,0:T(1,128)}', space=vmem, size = 0x12000, scoped, tag = 'internal scratch']
  %s0 = inlined_call_operand.vmem [shape: f32[2,8,32], index: 0, kind: input, shape index: {}]
  %s1 = inlined_call_operand.vmem [shape: bf16[32,96], index: 1, kind: input, shape index: {}]
  %s2 = inlined_call_operand.vmem [shape: f32[1,96], index: 2, kind: input, shape index: {}]
  %s3 = inlined_call_operand.vmem [shape: bf16[32,32], index: 3, kind: input, shape index: {}]
  %s4 = inlined_call_operand.vmem [shape: f32[1,32], index: 4, kind: input, shape index: {}]
  %s5 = inlined_call_operand.vmem [shape: f32[1,32], index: 5, kind: input, shape index: {}]
  %s6 = inlined_call_operand.vmem [shape: f32[1,32], index: 6, kind: input, shape index: {}]
  %s7 = inlined_call_operand.vmem [shape: f32[1,32], index: 7, kind: input, shape index: {}]
  %s8 = inlined_call_operand.vmem [shape: f32[1,32], index: 8, kind: input, shape index: {}]
  %s9 = inlined_call_operand.vmem [shape: bf16[32,128], index: 9, kind: input, shape index: {}]
  %s10 = inlined_call_operand.vmem [shape: f32[1,128], index: 10, kind: input, shape index: {}]
  %s11 = inlined_call_operand.vmem [shape: bf16[128,32], index: 11, kind: input, shape index: {}]
  %s12 = inlined_call_operand.vmem [shape: f32[1,32], index: 12, kind: input, shape index: {}]
  %s13 = inlined_call_operand.hbm [shape: f32[2,8,32], index: 13, kind: output, shape index: {}]
  %s14 = sld [smem:[#allocation0]]
  $region62: #{tpu_custom_call.1} parent=0
    _
  %s16 = ssub.s32 1, %s14
  %s17 = scalar_select 0, %s16, %s14
  $region1: #{tpu_custom_call.1} parent=0
    #allocation2 [shape = 'u8[8192]{0}', space=vmem, size = 0x2000, scoped, tag = 'output window, operand 0, single buffered']
    #allocation3 [shape = 's32[1]{0}', space=sflag, size = 0x4, scoped, tag = 'scoped memory for tpu_custom_call.1']
    %18 = vsyncpa [#allocation3], 0
    // Predicated region
    $region2: #{tpu_custom_call.1} parent=1 // pred_check
      _
    $region3: #{tpu_custom_call.1} parent=1 // pred_check_branch
      %20 = sbr.rel (0) target = $region5
    $region4: #{tpu_custom_call.1} parent=1 // pred_region
      _
    $region5: #{tpu_custom_call.1} parent=1 // pred_fallthru
      _
    // Predicated region
    $region6: #{tpu_custom_call.1} parent=1 // pred_check
      _
    $region7: #{tpu_custom_call.1} parent=1 // pred_check_branch
      %22 = sbr.rel (0) target = $region9
    $region8: #{tpu_custom_call.1} parent=1 // pred_region
      _
    $region9: #{tpu_custom_call.1} parent=1 // pred_fallthru
      _
    // Predicated region
    $region10: #{tpu_custom_call.1} parent=1 // pred_check
      _
    $region11: #{tpu_custom_call.1} parent=1 // pred_check_branch
      %24 = sbr.rel (0) target = $region13
    $region12: #{tpu_custom_call.1} parent=1 // pred_region
      _
    $region13: #{tpu_custom_call.1} parent=1 // pred_fallthru
      _
    // Predicated region
    $region14: #{tpu_custom_call.1} parent=1 // pred_check
      _
    $region15: #{tpu_custom_call.1} parent=1 // pred_check_branch
      %26 = sbr.rel (0) target = $region17
    $region16: #{tpu_custom_call.1} parent=1 // pred_region
      _
    $region17: #{tpu_custom_call.1} parent=1 // pred_fallthru
      _
    // Predicated region
    $region18: #{tpu_custom_call.1} parent=1 // pred_check
      _
    $region19: #{tpu_custom_call.1} parent=1 // pred_check_branch
      %28 = sbr.rel (0) target = $region21
    $region20: #{tpu_custom_call.1} parent=1 // pred_region
      _
    $region21: #{tpu_custom_call.1} parent=1 // pred_fallthru
      _
    // Predicated region
    $region22: #{tpu_custom_call.1} parent=1 // pred_check
      _
    $region23: #{tpu_custom_call.1} parent=1 // pred_check_branch
      %30 = sbr.rel (0) target = $region25
    $region24: #{tpu_custom_call.1} parent=1 // pred_region
      _
    $region25: #{tpu_custom_call.1} parent=1 // pred_fallthru
      _
    // Predicated region
    $region26: #{tpu_custom_call.1} parent=1 // pred_check
      _
    $region27: #{tpu_custom_call.1} parent=1 // pred_check_branch
      %32 = sbr.rel (0) target = $region29
    $region28: #{tpu_custom_call.1} parent=1 // pred_region
      _
    $region29: #{tpu_custom_call.1} parent=1 // pred_fallthru
      _
    // Predicated region
    $region30: #{tpu_custom_call.1} parent=1 // pred_check
      _
    $region31: #{tpu_custom_call.1} parent=1 // pred_check_branch
      %34 = sbr.rel (0) target = $region33
    $region32: #{tpu_custom_call.1} parent=1 // pred_region
      _
    $region33: #{tpu_custom_call.1} parent=1 // pred_fallthru
      _
    // Predicated region
    $region34: #{tpu_custom_call.1} parent=1 // pred_check
      _
    $region35: #{tpu_custom_call.1} parent=1 // pred_check_branch
      %36 = sbr.rel (0) target = $region37
    $region36: #{tpu_custom_call.1} parent=1 // pred_region
      _
    $region37: #{tpu_custom_call.1} parent=1 // pred_fallthru
      _
    // Predicated region
    $region38: #{tpu_custom_call.1} parent=1 // pred_check
      _
    $region39: #{tpu_custom_call.1} parent=1 // pred_check_branch
      %38 = sbr.rel (0) target = $region41
    $region40: #{tpu_custom_call.1} parent=1 // pred_region
      _
    $region41: #{tpu_custom_call.1} parent=1 // pred_fallthru
      _
    // Predicated region
    $region42: #{tpu_custom_call.1} parent=1 // pred_check
      _
    $region43: #{tpu_custom_call.1} parent=1 // pred_check_branch
      %40 = sbr.rel (0) target = $region45
    $region44: #{tpu_custom_call.1} parent=1 // pred_region
      _
    $region45: #{tpu_custom_call.1} parent=1 // pred_fallthru
      _
    // Predicated region
    $region46: #{tpu_custom_call.1} parent=1 // pred_check
      _
    $region47: #{tpu_custom_call.1} parent=1 // pred_check_branch
      %42 = sbr.rel (0) target = $region49
    $region48: #{tpu_custom_call.1} parent=1 // pred_region
      _
    $region49: #{tpu_custom_call.1} parent=1 // pred_fallthru
      _
    // Predicated region
    $region50: #{tpu_custom_call.1} parent=1 // pred_check
      _
    $region51: #{tpu_custom_call.1} parent=1 // pred_check_branch
      %44 = sbr.rel (0) target = $region53
    $region52: #{tpu_custom_call.1} parent=1 // pred_region
      _
    $region53: #{tpu_custom_call.1} parent=1 // pred_fallthru
      _
    %v46 = vld [vmem:[%s0] sm:$0xff]
    %v47 = vld [vmem:[%s0 + $0x8] sm:$0xff]
    %v48 = vld [vmem:[%s5] sm:$0x1]
    %v49 = vld [vmem:[%s6] sm:$0x1]
    %vm50 = vcmask 261120
    %v51 = vsel %vm50, %v46, 0.0
    %52 = vadd.xlane.f32.xlu0 %v51
    %v53 = vpop.xlane.xlu0 %52
    %v54 = vsel %vm50, %v47, 0.0
    %55 = vadd.xlane.f32.xlu0 %v54
    %v56 = vpop.xlane.xlu0 %55
    %v57 = vrcp.pop 32.0
    %v58 = vmul.f32 %v53, %v57
    %v59 = vmul.f32 %v56, %v57
    %v60 = vsub.f32 %v46, %v58
    %v61 = vsub.f32 %v47, %v59
    %v62 = vmul.f32 %v60, %v60
    %v63 = vmul.f32 %v61, %v61
    %v64 = vsel %vm50, %v62, 0.0
    %65 = vadd.xlane.f32.xlu0 %v64
    %v66 = vpop.xlane.xlu0 %65
    %v67 = vsel %vm50, %v63, 0.0
    %68 = vadd.xlane.f32.xlu0 %v67
    %v69 = vpop.xlane.xlu0 %68
    %v70 = vmul.f32 %v66, %v57
    %v71 = vmul.f32 %v69, %v57
    %v72 = vadd.f32 %v70, 1e-05
    %v73 = vadd.f32 %v71, 1e-05
    %v74 = vrsqrt.pop %v72
    %v75 = vrsqrt.pop %v73
    %v76 = vmul.f32 %v60, %v74
    %v77 = vmul.f32 %v61, %v75
    %v79 = vlaneseq
    %v80 = vshrl.u32 %v79, 7
    %v81 = vsub.s32 0, %v80
    %v82 = vrot.slane %v48, %v81
    %v84 = vmul.f32 %v76, %v82
    %v85 = vmul.f32 %v77, %v82
    %v87 = vlaneseq
    %v88 = vshrl.u32 %v87, 7
    %v89 = vsub.s32 0, %v88
    %v90 = vrot.slane %v49, %v89
    %v92 = vadd.f32 %v84, %v90
    %v93 = vadd.f32 %v85, %v90
    %v94 = vpack.c.bf16 %v93, %v92
    %v95 = vld [vmem:[%s1] sm:$0xf]
    %v96 = vld [vmem:[%s1 + $0x4] sm:$0xf]
    %v97 = vld [vmem:[%s1 + $0x8] sm:$0xf]
    %v98 = vld [vmem:[%s1 + $0xc] sm:$0xf]
    %v99 = vld [vmem:[%s2] sm:$0x1]
    %v101 = vlaneseq
    %v102 = vshrl.u32 %v101, 7
    %v103 = vsub.s32 0, %v102
    %v104 = vrot.slane %v99, %v103
    %v110 = vunpack.c.l.b16 %v95
    %v111 = vunpack.c.l.b16 %v96
    %v112 = vunpack.c.l.b16 %v97
    %v113 = vunpack.c.l.b16 %v98
    %v114 = vpack.c.b16 %v111, %v110
    %v115 = vpack.c.b16 %v113, %v112
    %v119 = vsel %vm50, %v94, 0
    %121 = vmatprep.subr.bf16.mxu0 0
    %122 = vmatpush1.bf16.msra.mxu0 %v114
    %123 = vmatprep.subr.bf16.mxu0 0
    %124 = vmatpush1.bf16.msra.mxu0 %v115
    %125 = vmatprep.subr.bf16.mxu0 0
    %126 = vmatpush1.bf16.msra.mxu0 0
    %127 = vmatprep.subr.bf16.mxu0 0
    %128 = vmatpush1.bf16.msra.mxu0 0
    %129 = vmatprep.subr.bf16.mxu0 0
    %130 = vmatpush1.bf16.msra.mxu0 0
    %131 = vmatprep.subr.bf16.mxu0 0
    %132 = vmatpush1.bf16.msra.mxu0 0
    %133 = vmatprep.subr.bf16.mxu0 0
    %134 = vmatpush1.bf16.msra.mxu0 0
    %135 = vmatprep.subr.bf16.mxu0 0
    %136 = vmatpush1.bf16.msra.mxu0 0
    %137 = vmatprep.subr.bf16.mxu0 0
    %138 = vmatpush1.bf16.msra.mxu0 0
    %139 = vmatprep.subr.bf16.mxu0 0
    %140 = vmatpush1.bf16.msra.mxu0 0
    %141 = vmatprep.subr.bf16.mxu0 0
    %142 = vmatpush1.bf16.msra.mxu0 0
    %143 = vmatprep.subr.bf16.mxu0 0
    %144 = vmatpush1.bf16.msra.mxu0 0
    %145 = vmatprep.subr.bf16.mxu0 0
    %146 = vmatpush1.bf16.msra.mxu0 0
    %147 = vmatprep.subr.bf16.mxu0 0
    %148 = vmatpush1.bf16.msra.mxu0 0
    %149 = vmatprep.subr.bf16.mxu0 0
    %150 = vmatpush1.bf16.msra.mxu0 0
    %151 = vmatprep.subr.bf16.mxu0 0
    %152 = vmatpush1.bf16.msra.mxu0 0
    %153 = vmatprep.mubr.bf16.mxu0 0
    %154 = vmatmul.mubr.bf16.gmra.mrb[0].mxu0 %v119
    %v155 = vpop.f32.mrb[0].mxu0
    %v156 = vadd.f32 %v104, %v155
    %v157 = vpop.f32.mrb[0].mxu0
    %v158 = vpop.f32.mrb[0].mxu0
    %v159 = vadd.f32 %v104, %v158
    %v160 = vpop.f32.mrb[0].mxu0
    %161 = vdwg.mxu0
    %v162 = vpack.c.bf16 %v159, %v156
    %164 = vrot.lane.b32.xlu0 %v162, 96
    %v165 = vpop.permute.xlu0 %164
    %vm166 = vcmask 64512
    %v168 = vsel %vm166, %v162, 0
    %v171 = vsel %vm166, %v165, 0
    %173 = vmatprep.subr.bf16.mxu0 0
    %174 = vmatpush1.bf16.xpose.msra.mxu0 %v171
    %175 = vmatprep.subr.bf16.mxu0 0
    %176 = vmatpush1.bf16.xpose.msra.mxu0 0
    %177 = vmatprep.subr.bf16.mxu0 0
    %178 = vmatpush1.bf16.xpose.msra.mxu0 0
    %179 = vmatprep.subr.bf16.mxu0 0
    %180 = vmatpush1.bf16.xpose.msra.mxu0 0
    %181 = vmatprep.subr.bf16.mxu0 0
    %182 = vmatpush1.bf16.xpose.msra.mxu0 0
    %183 = vmatprep.subr.bf16.mxu0 0
    %184 = vmatpush1.bf16.xpose.msra.mxu0 0
    %185 = vmatprep.subr.bf16.mxu0 0
    %186 = vmatpush1.bf16.xpose.msra.mxu0 0
    %187 = vmatprep.subr.bf16.mxu0 0
    %188 = vmatpush1.bf16.xpose.msra.mxu0 0
    %189 = vmatprep.subr.bf16.mxu0 0
    %190 = vmatpush1.bf16.xpose.msra.mxu0 0
    %191 = vmatprep.subr.bf16.mxu0 0
    %192 = vmatpush1.bf16.xpose.msra.mxu0 0
    %193 = vmatprep.subr.bf16.mxu0 0
    %194 = vmatpush1.bf16.xpose.msra.mxu0 0
    %195 = vmatprep.subr.bf16.mxu0 0
    %196 = vmatpush1.bf16.xpose.msra.mxu0 0
    %197 = vmatprep.subr.bf16.mxu0 0
    %198 = vmatpush1.bf16.xpose.msra.mxu0 0
    %199 = vmatprep.subr.bf16.mxu0 0
    %200 = vmatpush1.bf16.xpose.msra.mxu0 0
    %201 = vmatprep.subr.bf16.mxu0 0
    %202 = vmatpush1.bf16.xpose.msra.mxu0 0
    %203 = vmatprep.subr.bf16.mxu0 0
    %204 = vmatpush1.bf16.xpose.msra.mxu0 0
    %205 = vmatprep.mubr.bf16.mxu0 0
    %206 = vmatmul.mubr.bf16.gmra.mrb[0].mxu0 %v168
    %v207 = vpop.f32.mrb[0].mxu0
    %v208 = vadd.f32 0.0, %v207
    %v209 = vpop.f32.mrb[0].mxu0
    %v210 = vpop.f32.mrb[0].mxu0
    %v211 = vpop.f32.mrb[0].mxu0
    %212 = vdwg.mxu0
    %v213 = vsel %vm166, %v208, -inf
    %214 = vmax.xlane.f32.xlu0 %v213
    %v215 = vpop.xlane.xlu0 %214
    %v216 = vsub.f32 %v208, %v215
    %v217 = vmul.f32 %v216, 1.442695
    %v218 = vpow.pop %v217
    %v219 = vsel %vm166, %v218, 0.0
    %220 = vadd.xlane.f32.xlu0 %v219
    %v221 = vpop.xlane.xlu0 %220
    %v222 = vrcp.pop %v221
    %v223 = vmul.f32 %v218, %v222
    %v224 = vpack.c.bf16 %v223, %v223
    %225 = vrot.lane.b32.xlu0 %v162, 64
    %v226 = vpop.permute.xlu0 %225
    %v228 = vsel %vm166, %v224, 0
    %vm230 = vcmask 1043456
    %v232 = vsel %vm230, %v226, 0
    %234 = vmatprep.subr.bf16.mxu0 0
    %235 = vmatpush1.bf16.msra.mxu0 %v232
    %236 = vmatprep.subr.bf16.mxu0 0
    %237 = vmatpush1.bf16.msra.mxu0 0
    %238 = vmatprep.subr.bf16.mxu0 0
    %239 = vmatpush1.bf16.msra.mxu0 0
    %240 = vmatprep.subr.bf16.mxu0 0
    %241 = vmatpush1.bf16.msra.mxu0 0
    %242 = vmatprep.subr.bf16.mxu0 0
    %243 = vmatpush1.bf16.msra.mxu0 0
    %244 = vmatprep.subr.bf16.mxu0 0
    %245 = vmatpush1.bf16.msra.mxu0 0
    %246 = vmatprep.subr.bf16.mxu0 0
    %247 = vmatpush1.bf16.msra.mxu0 0
    %248 = vmatprep.subr.bf16.mxu0 0
    %249 = vmatpush1.bf16.msra.mxu0 0
    %250 = vmatprep.subr.bf16.mxu0 0
    %251 = vmatpush1.bf16.msra.mxu0 0
    %252 = vmatprep.subr.bf16.mxu0 0
    %253 = vmatpush1.bf16.msra.mxu0 0
    %254 = vmatprep.subr.bf16.mxu0 0
    %255 = vmatpush1.bf16.msra.mxu0 0
    %256 = vmatprep.subr.bf16.mxu0 0
    %257 = vmatpush1.bf16.msra.mxu0 0
    %258 = vmatprep.subr.bf16.mxu0 0
    %259 = vmatpush1.bf16.msra.mxu0 0
    %260 = vmatprep.subr.bf16.mxu0 0
    %261 = vmatpush1.bf16.msra.mxu0 0
    %262 = vmatprep.subr.bf16.mxu0 0
    %263 = vmatpush1.bf16.msra.mxu0 0
    %264 = vmatprep.subr.bf16.mxu0 0
    %265 = vmatpush1.bf16.msra.mxu0 0
    %266 = vmatprep.mubr.bf16.mxu0 0
    %267 = vmatmul.mubr.bf16.gmra.mrb[0].mxu0 %v228
    %v268 = vpop.f32.mrb[0].mxu0
    %v269 = vadd.f32 0.0, %v268
    %v270 = vpop.f32.mrb[0].mxu0
    %v271 = vpop.f32.mrb[0].mxu0
    %v272 = vpop.f32.mrb[0].mxu0
    %273 = vdwg.mxu0
    %v274 = vrot.slane %v162, 4
    %275 = vrot.lane.b32.xlu0 %v274, 96
    %v276 = vpop.permute.xlu0 %275
    %v278 = vsel %vm166, %v274, 0
    %v281 = vsel %vm166, %v276, 0
    %283 = vmatprep.subr.bf16.mxu0 0
    %284 = vmatpush1.bf16.xpose.msra.mxu0 %v281
    %285 = vmatprep.subr.bf16.mxu0 0
    %286 = vmatpush1.bf16.xpose.msra.mxu0 0
    %287 = vmatprep.subr.bf16.mxu0 0
    %288 = vmatpush1.bf16.xpose.msra.mxu0 0
    %289 = vmatprep.subr.bf16.mxu0 0
    %290 = vmatpush1.bf16.xpose.msra.mxu0 0
    %291 = vmatprep.subr.bf16.mxu0 0
    %292 = vmatpush1.bf16.xpose.msra.mxu0 0
    %293 = vmatprep.subr.bf16.mxu0 0
    %294 = vmatpush1.bf16.xpose.msra.mxu0 0
    %295 = vmatprep.subr.bf16.mxu0 0
    %296 = vmatpush1.bf16.xpose.msra.mxu0 0
    %297 = vmatprep.subr.bf16.mxu0 0
    %298 = vmatpush1.bf16.xpose.msra.mxu0 0
    %299 = vmatprep.subr.bf16.mxu0 0
    %300 = vmatpush1.bf16.xpose.msra.mxu0 0
    %301 = vmatprep.subr.bf16.mxu0 0
    %302 = vmatpush1.bf16.xpose.msra.mxu0 0
    %303 = vmatprep.subr.bf16.mxu0 0
    %304 = vmatpush1.bf16.xpose.msra.mxu0 0
    %305 = vmatprep.subr.bf16.mxu0 0
    %306 = vmatpush1.bf16.xpose.msra.mxu0 0
    %307 = vmatprep.subr.bf16.mxu0 0
    %308 = vmatpush1.bf16.xpose.msra.mxu0 0
    %309 = vmatprep.subr.bf16.mxu0 0
    %310 = vmatpush1.bf16.xpose.msra.mxu0 0
    %311 = vmatprep.subr.bf16.mxu0 0
    %312 = vmatpush1.bf16.xpose.msra.mxu0 0
    %313 = vmatprep.subr.bf16.mxu0 0
    %314 = vmatpush1.bf16.xpose.msra.mxu0 0
    %315 = vmatprep.mubr.bf16.mxu0 0
    %316 = vmatmul.mubr.bf16.gmra.mrb[0].mxu0 %v278
    %v317 = vpop.f32.mrb[0].mxu0
    %v318 = vadd.f32 0.0, %v317
    %v319 = vpop.f32.mrb[0].mxu0
    %v320 = vpop.f32.mrb[0].mxu0
    %v321 = vpop.f32.mrb[0].mxu0
    %322 = vdwg.mxu0
    %v323 = vsel %vm166, %v318, -inf
    %324 = vmax.xlane.f32.xlu0 %v323
    %v325 = vpop.xlane.xlu0 %324
    %v326 = vsub.f32 %v318, %v325
    %v327 = vmul.f32 %v326, 1.442695
    %v328 = vpow.pop %v327
    %v329 = vsel %vm166, %v328, 0.0
    %330 = vadd.xlane.f32.xlu0 %v329
    %v331 = vpop.xlane.xlu0 %330
    %v332 = vrcp.pop %v331
    %v333 = vmul.f32 %v328, %v332
    %v334 = vpack.c.bf16 %v333, %v333
    %335 = vrot.lane.b32.xlu0 %v274, 64
    %v336 = vpop.permute.xlu0 %335
    %v338 = vsel %vm166, %v334, 0
    %v341 = vsel %vm230, %v336, 0
    %343 = vmatprep.subr.bf16.mxu0 0
    %344 = vmatpush1.bf16.msra.mxu0 %v341
    %345 = vmatprep.subr.bf16.mxu0 0
    %346 = vmatpush1.bf16.msra.mxu0 0
    %347 = vmatprep.subr.bf16.mxu0 0
    %348 = vmatpush1.bf16.msra.mxu0 0
    %349 = vmatprep.subr.bf16.mxu0 0
    %350 = vmatpush1.bf16.msra.mxu0 0
    %351 = vmatprep.subr.bf16.mxu0 0
    %352 = vmatpush1.bf16.msra.mxu0 0
    %353 = vmatprep.subr.bf16.mxu0 0
    %354 = vmatpush1.bf16.msra.mxu0 0
    %355 = vmatprep.subr.bf16.mxu0 0
    %356 = vmatpush1.bf16.msra.mxu0 0
    %357 = vmatprep.subr.bf16.mxu0 0
    %358 = vmatpush1.bf16.msra.mxu0 0
    %359 = vmatprep.subr.bf16.mxu0 0
    %360 = vmatpush1.bf16.msra.mxu0 0
    %361 = vmatprep.subr.bf16.mxu0 0
    %362 = vmatpush1.bf16.msra.mxu0 0
    %363 = vmatprep.subr.bf16.mxu0 0
    %364 = vmatpush1.bf16.msra.mxu0 0
    %365 = vmatprep.subr.bf16.mxu0 0
    %366 = vmatpush1.bf16.msra.mxu0 0
    %367 = vmatprep.subr.bf16.mxu0 0
    %368 = vmatpush1.bf16.msra.mxu0 0
    %369 = vmatprep.subr.bf16.mxu0 0
    %370 = vmatpush1.bf16.msra.mxu0 0
    %371 = vmatprep.subr.bf16.mxu0 0
    %372 = vmatpush1.bf16.msra.mxu0 0
    %373 = vmatprep.subr.bf16.mxu0 0
    %374 = vmatpush1.bf16.msra.mxu0 0
    %375 = vmatprep.mubr.bf16.mxu0 0
    %376 = vmatmul.mubr.bf16.gmra.mrb[0].mxu0 %v338
    %v377 = vpop.f32.mrb[0].mxu0
    %v378 = vadd.f32 0.0, %v377
    %v379 = vpop.f32.mrb[0].mxu0
    %v380 = vpop.f32.mrb[0].mxu0
    %v381 = vpop.f32.mrb[0].mxu0
    %382 = vdwg.mxu0
    %383 = vrot.lane.b32.xlu0 %v162, 120
    %v384 = vpop.permute.xlu0 %383
    %385 = vrot.lane.b32.xlu0 %v162, 88
    %v386 = vpop.permute.xlu0 %385
    %v388 = vsel %vm166, %v384, 0
    %v391 = vsel %vm166, %v386, 0
    %393 = vmatprep.subr.bf16.mxu0 0
    %394 = vmatpush1.bf16.xpose.msra.mxu0 %v391
    %395 = vmatprep.subr.bf16.mxu0 0
    %396 = vmatpush1.bf16.xpose.msra.mxu0 0
    %397 = vmatprep.subr.bf16.mxu0 0
    %398 = vmatpush1.bf16.xpose.msra.mxu0 0
    %399 = vmatprep.subr.bf16.mxu0 0
    %400 = vmatpush1.bf16.xpose.msra.mxu0 0
    %401 = vmatprep.subr.bf16.mxu0 0
    %402 = vmatpush1.bf16.xpose.msra.mxu0 0
    %403 = vmatprep.subr.bf16.mxu0 0
    %404 = vmatpush1.bf16.xpose.msra.mxu0 0
    %405 = vmatprep.subr.bf16.mxu0 0
    %406 = vmatpush1.bf16.xpose.msra.mxu0 0
    %407 = vmatprep.subr.bf16.mxu0 0
    %408 = vmatpush1.bf16.xpose.msra.mxu0 0
    %409 = vmatprep.subr.bf16.mxu0 0
    %410 = vmatpush1.bf16.xpose.msra.mxu0 0
    %411 = vmatprep.subr.bf16.mxu0 0
    %412 = vmatpush1.bf16.xpose.msra.mxu0 0
    %413 = vmatprep.subr.bf16.mxu0 0
    %414 = vmatpush1.bf16.xpose.msra.mxu0 0
    %415 = vmatprep.subr.bf16.mxu0 0
    %416 = vmatpush1.bf16.xpose.msra.mxu0 0
    %417 = vmatprep.subr.bf16.mxu0 0
    %418 = vmatpush1.bf16.xpose.msra.mxu0 0
    %419 = vmatprep.subr.bf16.mxu0 0
    %420 = vmatpush1.bf16.xpose.msra.mxu0 0
    %421 = vmatprep.subr.bf16.mxu0 0
    %422 = vmatpush1.bf16.xpose.msra.mxu0 0
    %423 = vmatprep.subr.bf16.mxu0 0
    %424 = vmatpush1.bf16.xpose.msra.mxu0 0
    %425 = vmatprep.mubr.bf16.mxu0 0
    %426 = vmatmul.mubr.bf16.gmra.mrb[0].mxu0 %v388
    %v427 = vpop.f32.mrb[0].mxu0
    %v428 = vadd.f32 0.0, %v427
    %v429 = vpop.f32.mrb[0].mxu0
    %v430 = vpop.f32.mrb[0].mxu0
    %v431 = vpop.f32.mrb[0].mxu0
    %432 = vdwg.mxu0
    %v433 = vsel %vm166, %v428, -inf
    %434 = vmax.xlane.f32.xlu0 %v433
    %v435 = vpop.xlane.xlu0 %434
    %v436 = vsub.f32 %v428, %v435
    %v437 = vmul.f32 %v436, 1.442695
    %v438 = vpow.pop %v437
    %v439 = vsel %vm166, %v438, 0.0
    %440 = vadd.xlane.f32.xlu0 %v439
    %v441 = vpop.xlane.xlu0 %440
    %v442 = vrcp.pop %v441
    %v443 = vmul.f32 %v438, %v442
    %v444 = vpack.c.bf16 %v443, %v443
    %445 = vrot.lane.b32.xlu0 %v162, 56
    %v446 = vpop.permute.xlu0 %445
    %v448 = vsel %vm166, %v444, 0
    %v451 = vsel %vm230, %v446, 0
    %453 = vmatprep.subr.bf16.mxu0 0
    %454 = vmatpush1.bf16.msra.mxu0 %v451
    %455 = vmatprep.subr.bf16.mxu0 0
    %456 = vmatpush1.bf16.msra.mxu0 0
    %457 = vmatprep.subr.bf16.mxu0 0
    %458 = vmatpush1.bf16.msra.mxu0 0
    %459 = vmatprep.subr.bf16.mxu0 0
    %460 = vmatpush1.bf16.msra.mxu0 0
    %461 = vmatprep.subr.bf16.mxu0 0
    %462 = vmatpush1.bf16.msra.mxu0 0
    %463 = vmatprep.subr.bf16.mxu0 0
    %464 = vmatpush1.bf16.msra.mxu0 0
    %465 = vmatprep.subr.bf16.mxu0 0
    %466 = vmatpush1.bf16.msra.mxu0 0
    %467 = vmatprep.subr.bf16.mxu0 0
    %468 = vmatpush1.bf16.msra.mxu0 0
    %469 = vmatprep.subr.bf16.mxu0 0
    %470 = vmatpush1.bf16.msra.mxu0 0
    %471 = vmatprep.subr.bf16.mxu0 0
    %472 = vmatpush1.bf16.msra.mxu0 0
    %473 = vmatprep.subr.bf16.mxu0 0
    %474 = vmatpush1.bf16.msra.mxu0 0
    %475 = vmatprep.subr.bf16.mxu0 0
    %476 = vmatpush1.bf16.msra.mxu0 0
    %477 = vmatprep.subr.bf16.mxu0 0
    %478 = vmatpush1.bf16.msra.mxu0 0
    %479 = vmatprep.subr.bf16.mxu0 0
    %480 = vmatpush1.bf16.msra.mxu0 0
    %481 = vmatprep.subr.bf16.mxu0 0
    %482 = vmatpush1.bf16.msra.mxu0 0
    %483 = vmatprep.subr.bf16.mxu0 0
    %484 = vmatpush1.bf16.msra.mxu0 0
    %485 = vmatprep.mubr.bf16.mxu0 0
    %486 = vmatmul.mubr.bf16.gmra.mrb[0].mxu0 %v448
    %v487 = vpop.f32.mrb[0].mxu0
    %v488 = vadd.f32 0.0, %v487
    %v489 = vpop.f32.mrb[0].mxu0
    %v490 = vpop.f32.mrb[0].mxu0
    %v491 = vpop.f32.mrb[0].mxu0
    %492 = vdwg.mxu0
    %493 = vrot.lane.b32.xlu0 %v274, 120
    %v494 = vpop.permute.xlu0 %493
    %495 = vrot.lane.b32.xlu0 %v274, 88
    %v496 = vpop.permute.xlu0 %495
    %v498 = vsel %vm166, %v494, 0
    %v501 = vsel %vm166, %v496, 0
    %503 = vmatprep.subr.bf16.mxu0 0
    %504 = vmatpush1.bf16.xpose.msra.mxu0 %v501
    %505 = vmatprep.subr.bf16.mxu0 0
    %506 = vmatpush1.bf16.xpose.msra.mxu0 0
    %507 = vmatprep.subr.bf16.mxu0 0
    %508 = vmatpush1.bf16.xpose.msra.mxu0 0
    %509 = vmatprep.subr.bf16.mxu0 0
    %510 = vmatpush1.bf16.xpose.msra.mxu0 0
    %511 = vmatprep.subr.bf16.mxu0 0
    %512 = vmatpush1.bf16.xpose.msra.mxu0 0
    %513 = vmatprep.subr.bf16.mxu0 0
    %514 = vmatpush1.bf16.xpose.msra.mxu0 0
    %515 = vmatprep.subr.bf16.mxu0 0
    %516 = vmatpush1.bf16.xpose.msra.mxu0 0
    %517 = vmatprep.subr.bf16.mxu0 0
    %518 = vmatpush1.bf16.xpose.msra.mxu0 0
    %519 = vmatprep.subr.bf16.mxu0 0
    %520 = vmatpush1.bf16.xpose.msra.mxu0 0
    %521 = vmatprep.subr.bf16.mxu0 0
    %522 = vmatpush1.bf16.xpose.msra.mxu0 0
    %523 = vmatprep.subr.bf16.mxu0 0
    %524 = vmatpush1.bf16.xpose.msra.mxu0 0
    %525 = vmatprep.subr.bf16.mxu0 0
    %526 = vmatpush1.bf16.xpose.msra.mxu0 0
    %527 = vmatprep.subr.bf16.mxu0 0
    %528 = vmatpush1.bf16.xpose.msra.mxu0 0
    %529 = vmatprep.subr.bf16.mxu0 0
    %530 = vmatpush1.bf16.xpose.msra.mxu0 0
    %531 = vmatprep.subr.bf16.mxu0 0
    %532 = vmatpush1.bf16.xpose.msra.mxu0 0
    %533 = vmatprep.subr.bf16.mxu0 0
    %534 = vmatpush1.bf16.xpose.msra.mxu0 0
    %535 = vmatprep.mubr.bf16.mxu0 0
    %536 = vmatmul.mubr.bf16.gmra.mrb[0].mxu0 %v498
    %v537 = vpop.f32.mrb[0].mxu0
    %v538 = vadd.f32 0.0, %v537
    %v539 = vpop.f32.mrb[0].mxu0
    %v540 = vpop.f32.mrb[0].mxu0
    %v541 = vpop.f32.mrb[0].mxu0
    %542 = vdwg.mxu0
    %v543 = vsel %vm166, %v538, -inf
    %544 = vmax.xlane.f32.xlu0 %v543
    %v545 = vpop.xlane.xlu0 %544
    %v546 = vsub.f32 %v538, %v545
    %v547 = vmul.f32 %v546, 1.442695
    %v548 = vpow.pop %v547
    %v549 = vsel %vm166, %v548, 0.0
    %550 = vadd.xlane.f32.xlu0 %v549
    %v551 = vpop.xlane.xlu0 %550
    %v552 = vrcp.pop %v551
    %v553 = vmul.f32 %v548, %v552
    %v554 = vpack.c.bf16 %v553, %v553
    %555 = vrot.lane.b32.xlu0 %v274, 56
    %v556 = vpop.permute.xlu0 %555
    %v558 = vsel %vm166, %v554, 0
    %v561 = vsel %vm230, %v556, 0
    %563 = vmatprep.subr.bf16.mxu0 0
    %564 = vmatpush1.bf16.msra.mxu0 %v561
    %565 = vmatprep.subr.bf16.mxu0 0
    %566 = vmatpush1.bf16.msra.mxu0 0
    %567 = vmatprep.subr.bf16.mxu0 0
    %568 = vmatpush1.bf16.msra.mxu0 0
    %569 = vmatprep.subr.bf16.mxu0 0
    %570 = vmatpush1.bf16.msra.mxu0 0
    %571 = vmatprep.subr.bf16.mxu0 0
    %572 = vmatpush1.bf16.msra.mxu0 0
    %573 = vmatprep.subr.bf16.mxu0 0
    %574 = vmatpush1.bf16.msra.mxu0 0
    %575 = vmatprep.subr.bf16.mxu0 0
    %576 = vmatpush1.bf16.msra.mxu0 0
    %577 = vmatprep.subr.bf16.mxu0 0
    %578 = vmatpush1.bf16.msra.mxu0 0
    %579 = vmatprep.subr.bf16.mxu0 0
    %580 = vmatpush1.bf16.msra.mxu0 0
    %581 = vmatprep.subr.bf16.mxu0 0
    %582 = vmatpush1.bf16.msra.mxu0 0
    %583 = vmatprep.subr.bf16.mxu0 0
    %584 = vmatpush1.bf16.msra.mxu0 0
    %585 = vmatprep.subr.bf16.mxu0 0
    %586 = vmatpush1.bf16.msra.mxu0 0
    %587 = vmatprep.subr.bf16.mxu0 0
    %588 = vmatpush1.bf16.msra.mxu0 0
    %589 = vmatprep.subr.bf16.mxu0 0
    %590 = vmatpush1.bf16.msra.mxu0 0
    %591 = vmatprep.subr.bf16.mxu0 0
    %592 = vmatpush1.bf16.msra.mxu0 0
    %593 = vmatprep.subr.bf16.mxu0 0
    %594 = vmatpush1.bf16.msra.mxu0 0
    %595 = vmatprep.mubr.bf16.mxu0 0
    %596 = vmatmul.mubr.bf16.gmra.mrb[0].mxu0 %v558
    %v597 = vpop.f32.mrb[0].mxu0
    %v598 = vadd.f32 0.0, %v597
    %v599 = vpop.f32.mrb[0].mxu0
    %v600 = vpop.f32.mrb[0].mxu0
    %v601 = vpop.f32.mrb[0].mxu0
    %602 = vdwg.mxu0
    %603 = vrot.lane.b32.xlu0 %v162, 112
    %v604 = vpop.permute.xlu0 %603
    %605 = vrot.lane.b32.xlu0 %v162, 80
    %v606 = vpop.permute.xlu0 %605
    %v608 = vsel %vm166, %v604, 0
    %v611 = vsel %vm166, %v606, 0
    %613 = vmatprep.subr.bf16.mxu0 0
    %614 = vmatpush1.bf16.xpose.msra.mxu0 %v611
    %615 = vmatprep.subr.bf16.mxu0 0
    %616 = vmatpush1.bf16.xpose.msra.mxu0 0
    %617 = vmatprep.subr.bf16.mxu0 0
    %618 = vmatpush1.bf16.xpose.msra.mxu0 0
    %619 = vmatprep.subr.bf16.mxu0 0
    %620 = vmatpush1.bf16.xpose.msra.mxu0 0
    %621 = vmatprep.subr.bf16.mxu0 0
    %622 = vmatpush1.bf16.xpose.msra.mxu0 0
    %623 = vmatprep.subr.bf16.mxu0 0
    %624 = vmatpush1.bf16.xpose.msra.mxu0 0
    %625 = vmatprep.subr.bf16.mxu0 0
    %626 = vmatpush1.bf16.xpose.msra.mxu0 0
    %627 = vmatprep.subr.bf16.mxu0 0
    %628 = vmatpush1.bf16.xpose.msra.mxu0 0
    %629 = vmatprep.subr.bf16.mxu0 0
    %630 = vmatpush1.bf16.xpose.msra.mxu0 0
    %631 = vmatprep.subr.bf16.mxu0 0
    %632 = vmatpush1.bf16.xpose.msra.mxu0 0
    %633 = vmatprep.subr.bf16.mxu0 0
    %634 = vmatpush1.bf16.xpose.msra.mxu0 0
    %635 = vmatprep.subr.bf16.mxu0 0
    %636 = vmatpush1.bf16.xpose.msra.mxu0 0
    %637 = vmatprep.subr.bf16.mxu0 0
    %638 = vmatpush1.bf16.xpose.msra.mxu0 0
    %639 = vmatprep.subr.bf16.mxu0 0
    %640 = vmatpush1.bf16.xpose.msra.mxu0 0
    %641 = vmatprep.subr.bf16.mxu0 0
    %642 = vmatpush1.bf16.xpose.msra.mxu0 0
    %643 = vmatprep.subr.bf16.mxu0 0
    %644 = vmatpush1.bf16.xpose.msra.mxu0 0
    %645 = vmatprep.mubr.bf16.mxu0 0
    %646 = vmatmul.mubr.bf16.gmra.mrb[0].mxu0 %v608
    %v647 = vpop.f32.mrb[0].mxu0
    %v648 = vadd.f32 0.0, %v647
    %v649 = vpop.f32.mrb[0].mxu0
    %v650 = vpop.f32.mrb[0].mxu0
    %v651 = vpop.f32.mrb[0].mxu0
    %652 = vdwg.mxu0
    %v653 = vsel %vm166, %v648, -inf
    %654 = vmax.xlane.f32.xlu0 %v653
    %v655 = vpop.xlane.xlu0 %654
    %v656 = vsub.f32 %v648, %v655
    %v657 = vmul.f32 %v656, 1.442695
    %v658 = vpow.pop %v657
    %v659 = vsel %vm166, %v658, 0.0
    %660 = vadd.xlane.f32.xlu0 %v659
    %v661 = vpop.xlane.xlu0 %660
    %v662 = vrcp.pop %v661
    %v663 = vmul.f32 %v658, %v662
    %v664 = vpack.c.bf16 %v663, %v663
    %665 = vrot.lane.b32.xlu0 %v162, 48
    %v666 = vpop.permute.xlu0 %665
    %v668 = vsel %vm166, %v664, 0
    %v671 = vsel %vm230, %v666, 0
    %673 = vmatprep.subr.bf16.mxu0 0
    %674 = vmatpush1.bf16.msra.mxu0 %v671
    %675 = vmatprep.subr.bf16.mxu0 0
    %676 = vmatpush1.bf16.msra.mxu0 0
    %677 = vmatprep.subr.bf16.mxu0 0
    %678 = vmatpush1.bf16.msra.mxu0 0
    %679 = vmatprep.subr.bf16.mxu0 0
    %680 = vmatpush1.bf16.msra.mxu0 0
    %681 = vmatprep.subr.bf16.mxu0 0
    %682 = vmatpush1.bf16.msra.mxu0 0
    %683 = vmatprep.subr.bf16.mxu0 0
    %684 = vmatpush1.bf16.msra.mxu0 0
    %685 = vmatprep.subr.bf16.mxu0 0
    %686 = vmatpush1.bf16.msra.mxu0 0
    %687 = vmatprep.subr.bf16.mxu0 0
    %688 = vmatpush1.bf16.msra.mxu0 0
    %689 = vmatprep.subr.bf16.mxu0 0
    %690 = vmatpush1.bf16.msra.mxu0 0
    %691 = vmatprep.subr.bf16.mxu0 0
    %692 = vmatpush1.bf16.msra.mxu0 0
    %693 = vmatprep.subr.bf16.mxu0 0
    %694 = vmatpush1.bf16.msra.mxu0 0
    %695 = vmatprep.subr.bf16.mxu0 0
    %696 = vmatpush1.bf16.msra.mxu0 0
    %697 = vmatprep.subr.bf16.mxu0 0
    %698 = vmatpush1.bf16.msra.mxu0 0
    %699 = vmatprep.subr.bf16.mxu0 0
    %700 = vmatpush1.bf16.msra.mxu0 0
    %701 = vmatprep.subr.bf16.mxu0 0
    %702 = vmatpush1.bf16.msra.mxu0 0
    %703 = vmatprep.subr.bf16.mxu0 0
    %704 = vmatpush1.bf16.msra.mxu0 0
    %705 = vmatprep.mubr.bf16.mxu0 0
    %706 = vmatmul.mubr.bf16.gmra.mrb[0].mxu0 %v668
    %v707 = vpop.f32.mrb[0].mxu0
    %v708 = vadd.f32 0.0, %v707
    %v709 = vpop.f32.mrb[0].mxu0
    %v710 = vpop.f32.mrb[0].mxu0
    %v711 = vpop.f32.mrb[0].mxu0
    %712 = vdwg.mxu0
    %713 = vrot.lane.b32.xlu0 %v274, 112
    %v714 = vpop.permute.xlu0 %713
    %715 = vrot.lane.b32.xlu0 %v274, 80
    %v716 = vpop.permute.xlu0 %715
    %v718 = vsel %vm166, %v714, 0
    %v721 = vsel %vm166, %v716, 0
    %723 = vmatprep.subr.bf16.mxu0 0
    %724 = vmatpush1.bf16.xpose.msra.mxu0 %v721
    %725 = vmatprep.subr.bf16.mxu0 0
    %726 = vmatpush1.bf16.xpose.msra.mxu0 0
    %727 = vmatprep.subr.bf16.mxu0 0
    %728 = vmatpush1.bf16.xpose.msra.mxu0 0
    %729 = vmatprep.subr.bf16.mxu0 0
    %730 = vmatpush1.bf16.xpose.msra.mxu0 0
    %731 = vmatprep.subr.bf16.mxu0 0
    %732 = vmatpush1.bf16.xpose.msra.mxu0 0
    %733 = vmatprep.subr.bf16.mxu0 0
    %734 = vmatpush1.bf16.xpose.msra.mxu0 0
    %735 = vmatprep.subr.bf16.mxu0 0
    %736 = vmatpush1.bf16.xpose.msra.mxu0 0
    %737 = vmatprep.subr.bf16.mxu0 0
    %738 = vmatpush1.bf16.xpose.msra.mxu0 0
    %739 = vmatprep.subr.bf16.mxu0 0
    %740 = vmatpush1.bf16.xpose.msra.mxu0 0
    %741 = vmatprep.subr.bf16.mxu0 0
    %742 = vmatpush1.bf16.xpose.msra.mxu0 0
    %743 = vmatprep.subr.bf16.mxu0 0
    %744 = vmatpush1.bf16.xpose.msra.mxu0 0
    %745 = vmatprep.subr.bf16.mxu0 0
    %746 = vmatpush1.bf16.xpose.msra.mxu0 0
    %747 = vmatprep.subr.bf16.mxu0 0
    %748 = vmatpush1.bf16.xpose.msra.mxu0 0
    %749 = vmatprep.subr.bf16.mxu0 0
    %750 = vmatpush1.bf16.xpose.msra.mxu0 0
    %751 = vmatprep.subr.bf16.mxu0 0
    %752 = vmatpush1.bf16.xpose.msra.mxu0 0
    %753 = vmatprep.subr.bf16.mxu0 0
    %754 = vmatpush1.bf16.xpose.msra.mxu0 0
    %755 = vmatprep.mubr.bf16.mxu0 0
    %756 = vmatmul.mubr.bf16.gmra.mrb[0].mxu0 %v718
    %v757 = vpop.f32.mrb[0].mxu0
    %v758 = vadd.f32 0.0, %v757
    %v759 = vpop.f32.mrb[0].mxu0
    %v760 = vpop.f32.mrb[0].mxu0
    %v761 = vpop.f32.mrb[0].mxu0
    %762 = vdwg.mxu0
    %v763 = vsel %vm166, %v758, -inf
    %764 = vmax.xlane.f32.xlu0 %v763
    %v765 = vpop.xlane.xlu0 %764
    %v766 = vsub.f32 %v758, %v765
    %v767 = vmul.f32 %v766, 1.442695
    %v768 = vpow.pop %v767
    %v769 = vsel %vm166, %v768, 0.0
    %770 = vadd.xlane.f32.xlu0 %v769
    %v771 = vpop.xlane.xlu0 %770
    %v772 = vrcp.pop %v771
    %v773 = vmul.f32 %v768, %v772
    %v774 = vpack.c.bf16 %v773, %v773
    %775 = vrot.lane.b32.xlu0 %v274, 48
    %v776 = vpop.permute.xlu0 %775
    %v778 = vsel %vm166, %v774, 0
    %v781 = vsel %vm230, %v776, 0
    %783 = vmatprep.subr.bf16.mxu0 0
    %784 = vmatpush1.bf16.msra.mxu0 %v781
    %785 = vmatprep.subr.bf16.mxu0 0
    %786 = vmatpush1.bf16.msra.mxu0 0
    %787 = vmatprep.subr.bf16.mxu0 0
    %788 = vmatpush1.bf16.msra.mxu0 0
    %789 = vmatprep.subr.bf16.mxu0 0
    %790 = vmatpush1.bf16.msra.mxu0 0
    %791 = vmatprep.subr.bf16.mxu0 0
    %792 = vmatpush1.bf16.msra.mxu0 0
    %793 = vmatprep.subr.bf16.mxu0 0
    %794 = vmatpush1.bf16.msra.mxu0 0
    %795 = vmatprep.subr.bf16.mxu0 0
    %796 = vmatpush1.bf16.msra.mxu0 0
    %797 = vmatprep.subr.bf16.mxu0 0
    %798 = vmatpush1.bf16.msra.mxu0 0
    %799 = vmatprep.subr.bf16.mxu0 0
    %800 = vmatpush1.bf16.msra.mxu0 0
    %801 = vmatprep.subr.bf16.mxu0 0
    %802 = vmatpush1.bf16.msra.mxu0 0
    %803 = vmatprep.subr.bf16.mxu0 0
    %804 = vmatpush1.bf16.msra.mxu0 0
    %805 = vmatprep.subr.bf16.mxu0 0
    %806 = vmatpush1.bf16.msra.mxu0 0
    %807 = vmatprep.subr.bf16.mxu0 0
    %808 = vmatpush1.bf16.msra.mxu0 0
    %809 = vmatprep.subr.bf16.mxu0 0
    %810 = vmatpush1.bf16.msra.mxu0 0
    %811 = vmatprep.subr.bf16.mxu0 0
    %812 = vmatpush1.bf16.msra.mxu0 0
    %813 = vmatprep.subr.bf16.mxu0 0
    %814 = vmatpush1.bf16.msra.mxu0 0
    %815 = vmatprep.mubr.bf16.mxu0 0
    %816 = vmatmul.mubr.bf16.gmra.mrb[0].mxu0 %v778
    %v817 = vpop.f32.mrb[0].mxu0
    %v818 = vadd.f32 0.0, %v817
    %v819 = vpop.f32.mrb[0].mxu0
    %v820 = vpop.f32.mrb[0].mxu0
    %v821 = vpop.f32.mrb[0].mxu0
    %822 = vdwg.mxu0
    %823 = vrot.lane.b32.xlu0 %v162, 104
    %v824 = vpop.permute.xlu0 %823
    %825 = vrot.lane.b32.xlu0 %v162, 72
    %v826 = vpop.permute.xlu0 %825
    %v828 = vsel %vm166, %v824, 0
    %v831 = vsel %vm166, %v826, 0
    %833 = vmatprep.subr.bf16.mxu0 0
    %834 = vmatpush1.bf16.xpose.msra.mxu0 %v831
    %835 = vmatprep.subr.bf16.mxu0 0
    %836 = vmatpush1.bf16.xpose.msra.mxu0 0
    %837 = vmatprep.subr.bf16.mxu0 0
    %838 = vmatpush1.bf16.xpose.msra.mxu0 0
    %839 = vmatprep.subr.bf16.mxu0 0
    %840 = vmatpush1.bf16.xpose.msra.mxu0 0
    %841 = vmatprep.subr.bf16.mxu0 0
    %842 = vmatpush1.bf16.xpose.msra.mxu0 0
    %843 = vmatprep.subr.bf16.mxu0 0
    %844 = vmatpush1.bf16.xpose.msra.mxu0 0
    %845 = vmatprep.subr.bf16.mxu0 0
    %846 = vmatpush1.bf16.xpose.msra.mxu0 0
    %847 = vmatprep.subr.bf16.mxu0 0
    %848 = vmatpush1.bf16.xpose.msra.mxu0 0
    %849 = vmatprep.subr.bf16.mxu0 0
    %850 = vmatpush1.bf16.xpose.msra.mxu0 0
    %851 = vmatprep.subr.bf16.mxu0 0
    %852 = vmatpush1.bf16.xpose.msra.mxu0 0
    %853 = vmatprep.subr.bf16.mxu0 0
    %854 = vmatpush1.bf16.xpose.msra.mxu0 0
    %855 = vmatprep.subr.bf16.mxu0 0
    %856 = vmatpush1.bf16.xpose.msra.mxu0 0
    %857 = vmatprep.subr.bf16.mxu0 0
    %858 = vmatpush1.bf16.xpose.msra.mxu0 0
    %859 = vmatprep.subr.bf16.mxu0 0
    %860 = vmatpush1.bf16.xpose.msra.mxu0 0
    %861 = vmatprep.subr.bf16.mxu0 0
    %862 = vmatpush1.bf16.xpose.msra.mxu0 0
    %863 = vmatprep.subr.bf16.mxu0 0
    %864 = vmatpush1.bf16.xpose.msra.mxu0 0
    %865 = vmatprep.mubr.bf16.mxu0 0
    %866 = vmatmul.mubr.bf16.gmra.mrb[0].mxu0 %v828
    %v867 = vpop.f32.mrb[0].mxu0
    %v868 = vadd.f32 0.0, %v867
    %v869 = vpop.f32.mrb[0].mxu0
    %v870 = vpop.f32.mrb[0].mxu0
    %v871 = vpop.f32.mrb[0].mxu0
    %872 = vdwg.mxu0
    %v873 = vsel %vm166, %v868, -inf
    %874 = vmax.xlane.f32.xlu0 %v873
    %v875 = vpop.xlane.xlu0 %874
    %v876 = vsub.f32 %v868, %v875
    %v877 = vmul.f32 %v876, 1.442695
    %v878 = vpow.pop %v877
    %v879 = vsel %vm166, %v878, 0.0
    %880 = vadd.xlane.f32.xlu0 %v879
    %v881 = vpop.xlane.xlu0 %880
    %v882 = vrcp.pop %v881
    %v883 = vmul.f32 %v878, %v882
    %v884 = vpack.c.bf16 %v883, %v883
    %885 = vrot.lane.b32.xlu0 %v162, 40
    %v886 = vpop.permute.xlu0 %885
    %v888 = vsel %vm166, %v884, 0
    %v891 = vsel %vm230, %v886, 0
    %893 = vmatprep.subr.bf16.mxu0 0
    %894 = vmatpush1.bf16.msra.mxu0 %v891
    %895 = vmatprep.subr.bf16.mxu0 0
    %896 = vmatpush1.bf16.msra.mxu0 0
    %897 = vmatprep.subr.bf16.mxu0 0
    %898 = vmatpush1.bf16.msra.mxu0 0
    %899 = vmatprep.subr.bf16.mxu0 0
    %900 = vmatpush1.bf16.msra.mxu0 0
    %901 = vmatprep.subr.bf16.mxu0 0
    %902 = vmatpush1.bf16.msra.mxu0 0
    %903 = vmatprep.subr.bf16.mxu0 0
    %904 = vmatpush1.bf16.msra.mxu0 0
    %905 = vmatprep.subr.bf16.mxu0 0
    %906 = vmatpush1.bf16.msra.mxu0 0
    %907 = vmatprep.subr.bf16.mxu0 0
    %908 = vmatpush1.bf16.msra.mxu0 0
    %909 = vmatprep.subr.bf16.mxu0 0
    %910 = vmatpush1.bf16.msra.mxu0 0
    %911 = vmatprep.subr.bf16.mxu0 0
    %912 = vmatpush1.bf16.msra.mxu0 0
    %913 = vmatprep.subr.bf16.mxu0 0
    %914 = vmatpush1.bf16.msra.mxu0 0
    %915 = vmatprep.subr.bf16.mxu0 0
    %916 = vmatpush1.bf16.msra.mxu0 0
    %917 = vmatprep.subr.bf16.mxu0 0
    %918 = vmatpush1.bf16.msra.mxu0 0
    %919 = vmatprep.subr.bf16.mxu0 0
    %920 = vmatpush1.bf16.msra.mxu0 0
    %921 = vmatprep.subr.bf16.mxu0 0
    %922 = vmatpush1.bf16.msra.mxu0 0
    %923 = vmatprep.subr.bf16.mxu0 0
    %924 = vmatpush1.bf16.msra.mxu0 0
    %925 = vmatprep.mubr.bf16.mxu0 0
    %926 = vmatmul.mubr.bf16.gmra.mrb[0].mxu0 %v888
    %v927 = vpop.f32.mrb[0].mxu0
    %v928 = vadd.f32 0.0, %v927
    %v929 = vpop.f32.mrb[0].mxu0
    %v930 = vpop.f32.mrb[0].mxu0
    %v931 = vpop.f32.mrb[0].mxu0
    %932 = vdwg.mxu0
    %933 = vrot.lane.b32.xlu0 %v274, 104
    %v934 = vpop.permute.xlu0 %933
    %935 = vrot.lane.b32.xlu0 %v274, 72
    %v936 = vpop.permute.xlu0 %935
    %v938 = vsel %vm166, %v934, 0
    %v941 = vsel %vm166, %v936, 0
    %943 = vmatprep.subr.bf16.mxu0 0
    %944 = vmatpush1.bf16.xpose.msra.mxu0 %v941
    %945 = vmatprep.subr.bf16.mxu0 0
    %946 = vmatpush1.bf16.xpose.msra.mxu0 0
    %947 = vmatprep.subr.bf16.mxu0 0
    %948 = vmatpush1.bf16.xpose.msra.mxu0 0
    %949 = vmatprep.subr.bf16.mxu0 0
    %950 = vmatpush1.bf16.xpose.msra.mxu0 0
    %951 = vmatprep.subr.bf16.mxu0 0
    %952 = vmatpush1.bf16.xpose.msra.mxu0 0
    %953 = vmatprep.subr.bf16.mxu0 0
    %954 = vmatpush1.bf16.xpose.msra.mxu0 0
    %955 = vmatprep.subr.bf16.mxu0 0
    %956 = vmatpush1.bf16.xpose.msra.mxu0 0
    %957 = vmatprep.subr.bf16.mxu0 0
    %958 = vmatpush1.bf16.xpose.msra.mxu0 0
    %959 = vmatprep.subr.bf16.mxu0 0
    %960 = vmatpush1.bf16.xpose.msra.mxu0 0
    %961 = vmatprep.subr.bf16.mxu0 0
    %962 = vmatpush1.bf16.xpose.msra.mxu0 0
    %963 = vmatprep.subr.bf16.mxu0 0
    %964 = vmatpush1.bf16.xpose.msra.mxu0 0
    %965 = vmatprep.subr.bf16.mxu0 0
    %966 = vmatpush1.bf16.xpose.msra.mxu0 0
    %967 = vmatprep.subr.bf16.mxu0 0
    %968 = vmatpush1.bf16.xpose.msra.mxu0 0
    %969 = vmatprep.subr.bf16.mxu0 0
    %970 = vmatpush1.bf16.xpose.msra.mxu0 0
    %971 = vmatprep.subr.bf16.mxu0 0
    %972 = vmatpush1.bf16.xpose.msra.mxu0 0
    %973 = vmatprep.subr.bf16.mxu0 0
    %974 = vmatpush1.bf16.xpose.msra.mxu0 0
    %975 = vmatprep.mubr.bf16.mxu0 0
    %976 = vmatmul.mubr.bf16.gmra.mrb[0].mxu0 %v938
    %v977 = vpop.f32.mrb[0].mxu0
    %v978 = vadd.f32 0.0, %v977
    %v979 = vpop.f32.mrb[0].mxu0
    %v980 = vpop.f32.mrb[0].mxu0
    %v981 = vpop.f32.mrb[0].mxu0
    %982 = vdwg.mxu0
    %v983 = vsel %vm166, %v978, -inf
    %984 = vmax.xlane.f32.xlu0 %v983
    %v985 = vpop.xlane.xlu0 %984
    %v986 = vsub.f32 %v978, %v985
    %v987 = vmul.f32 %v986, 1.442695
    %v988 = vpow.pop %v987
    %v989 = vsel %vm166, %v988, 0.0
    %990 = vadd.xlane.f32.xlu0 %v989
    %v991 = vpop.xlane.xlu0 %990
    %v992 = vrcp.pop %v991
    %v993 = vmul.f32 %v988, %v992
    %v994 = vpack.c.bf16 %v993, %v993
    %995 = vrot.lane.b32.xlu0 %v274, 40
    %v996 = vpop.permute.xlu0 %995
    %v998 = vsel %vm166, %v994, 0
    %v1001 = vsel %vm230, %v996, 0
    %1003 = vmatprep.subr.bf16.mxu0 0
    %1004 = vmatpush1.bf16.msra.mxu0 %v1001
    %1005 = vmatprep.subr.bf16.mxu0 0
    %1006 = vmatpush1.bf16.msra.mxu0 0
    %1007 = vmatprep.subr.bf16.mxu0 0
    %1008 = vmatpush1.bf16.msra.mxu0 0
    %1009 = vmatprep.subr.bf16.mxu0 0
    %1010 = vmatpush1.bf16.msra.mxu0 0
    %1011 = vmatprep.subr.bf16.mxu0 0
    %1012 = vmatpush1.bf16.msra.mxu0 0
    %1013 = vmatprep.subr.bf16.mxu0 0
    %1014 = vmatpush1.bf16.msra.mxu0 0
    %1015 = vmatprep.subr.bf16.mxu0 0
    %1016 = vmatpush1.bf16.msra.mxu0 0
    %1017 = vmatprep.subr.bf16.mxu0 0
    %1018 = vmatpush1.bf16.msra.mxu0 0
    %1019 = vmatprep.subr.bf16.mxu0 0
    %1020 = vmatpush1.bf16.msra.mxu0 0
    %1021 = vmatprep.subr.bf16.mxu0 0
    %1022 = vmatpush1.bf16.msra.mxu0 0
    %1023 = vmatprep.subr.bf16.mxu0 0
    %1024 = vmatpush1.bf16.msra.mxu0 0
    %1025 = vmatprep.subr.bf16.mxu0 0
    %1026 = vmatpush1.bf16.msra.mxu0 0
    %1027 = vmatprep.subr.bf16.mxu0 0
    %1028 = vmatpush1.bf16.msra.mxu0 0
    %1029 = vmatprep.subr.bf16.mxu0 0
    %1030 = vmatpush1.bf16.msra.mxu0 0
    %1031 = vmatprep.subr.bf16.mxu0 0
    %1032 = vmatpush1.bf16.msra.mxu0 0
    %1033 = vmatprep.subr.bf16.mxu0 0
    %1034 = vmatpush1.bf16.msra.mxu0 0
    %1035 = vmatprep.mubr.bf16.mxu0 0
    %1036 = vmatmul.mubr.bf16.gmra.mrb[0].mxu0 %v998
    %v1037 = vpop.f32.mrb[0].mxu0
    %v1038 = vadd.f32 0.0, %v1037
    %v1039 = vpop.f32.mrb[0].mxu0
    %v1040 = vpop.f32.mrb[0].mxu0
    %v1041 = vpop.f32.mrb[0].mxu0
    %1042 = vdwg.mxu0
    %1045 = vrot.lane.b32.xlu0 %v488, 8
    %v1046 = vpop.permute.xlu0 %1045
    %1047 = vrot.lane.b32.xlu0 %v598, 8
    %v1048 = vpop.permute.xlu0 %1047
    %1053 = vrot.lane.b32.xlu0 %v708, 16
    %v1054 = vpop.permute.xlu0 %1053
    %1055 = vrot.lane.b32.xlu0 %v818, 16
    %v1056 = vpop.permute.xlu0 %1055
    %1061 = vrot.lane.b32.xlu0 %v928, 24
    %v1062 = vpop.permute.xlu0 %1061
    %1063 = vrot.lane.b32.xlu0 %v1038, 24
    %v1064 = vpop.permute.xlu0 %1063
    %v1067 = vsel %vm166, %v269, %v1046
    %v1068 = vsel %vm166, %v378, %v1048
    %vm1069 = vcmask 130048
    %v1070 = vsel %vm1069, %v1067, %v1054
    %v1071 = vsel %vm1069, %v1068, %v1056
    %vm1072 = vcmask 195584
    %v1073 = vsel %vm1072, %v1070, %v1062
    %v1074 = vsel %vm1072, %v1071, %v1064
    %v1075 = vpack.c.bf16 %v1074, %v1073
    %v1076 = vld [vmem:[%s3] sm:$0xf]
    %v1077 = vld [vmem:[%s3 + $0x4] sm:$0xf]
    %v1078 = vld [vmem:[%s3 + $0x8] sm:$0xf]
    %v1079 = vld [vmem:[%s3 + $0xc] sm:$0xf]
    %v1080 = vld [vmem:[%s4] sm:$0x1]
    %v1082 = vlaneseq
    %v1083 = vshrl.u32 %v1082, 7
    %v1084 = vsub.s32 0, %v1083
    %v1085 = vrot.slane %v1080, %v1084
    %v1091 = vunpack.c.l.b16 %v1076
    %v1092 = vunpack.c.l.b16 %v1077
    %v1093 = vunpack.c.l.b16 %v1078
    %v1094 = vunpack.c.l.b16 %v1079
    %v1095 = vpack.c.b16 %v1092, %v1091
    %v1096 = vpack.c.b16 %v1094, %v1093
    %v1100 = vsel %vm50, %v1075, 0
    %1102 = vmatprep.subr.bf16.mxu0 0
    %1103 = vmatpush1.bf16.msra.mxu0 %v1095
    %1104 = vmatprep.subr.bf16.mxu0 0
    %1105 = vmatpush1.bf16.msra.mxu0 %v1096
    %1106 = vmatprep.subr.bf16.mxu0 0
    %1107 = vmatpush1.bf16.msra.mxu0 0
    %1108 = vmatprep.subr.bf16.mxu0 0
    %1109 = vmatpush1.bf16.msra.mxu0 0
    %1110 = vmatprep.subr.bf16.mxu0 0
    %1111 = vmatpush1.bf16.msra.mxu0 0
    %1112 = vmatprep.subr.bf16.mxu0 0
    %1113 = vmatpush1.bf16.msra.mxu0 0
    %1114 = vmatprep.subr.bf16.mxu0 0
    %1115 = vmatpush1.bf16.msra.mxu0 0
    %1116 = vmatprep.subr.bf16.mxu0 0
    %1117 = vmatpush1.bf16.msra.mxu0 0
    %1118 = vmatprep.subr.bf16.mxu0 0
    %1119 = vmatpush1.bf16.msra.mxu0 0
    %1120 = vmatprep.subr.bf16.mxu0 0
    %1121 = vmatpush1.bf16.msra.mxu0 0
    %1122 = vmatprep.subr.bf16.mxu0 0
    %1123 = vmatpush1.bf16.msra.mxu0 0
    %1124 = vmatprep.subr.bf16.mxu0 0
    %1125 = vmatpush1.bf16.msra.mxu0 0
    %1126 = vmatprep.subr.bf16.mxu0 0
    %1127 = vmatpush1.bf16.msra.mxu0 0
    %1128 = vmatprep.subr.bf16.mxu0 0
    %1129 = vmatpush1.bf16.msra.mxu0 0
    %1130 = vmatprep.subr.bf16.mxu0 0
    %1131 = vmatpush1.bf16.msra.mxu0 0
    %1132 = vmatprep.subr.bf16.mxu0 0
    %1133 = vmatpush1.bf16.msra.mxu0 0
    %1134 = vmatprep.mubr.bf16.mxu0 0
    %1135 = vmatmul.mubr.bf16.gmra.mrb[0].mxu0 %v1100
    %v1136 = vpop.f32.mrb[0].mxu0
    %v1137 = vadd.f32 %v1085, %v1136
    %v1138 = vpop.f32.mrb[0].mxu0
    %v1139 = vpop.f32.mrb[0].mxu0
    %v1140 = vadd.f32 %v1085, %v1139
    %v1141 = vpop.f32.mrb[0].mxu0
    %1142 = vdwg.mxu0
    %v1143 = vadd.f32 %v46, %v1137
    %v1144 = vadd.f32 %v47, %v1140
    %v1145 = vld [vmem:[%s7] sm:$0x1]
    %v1146 = vld [vmem:[%s8] sm:$0x1]
    %v1147 = vsel %vm50, %v1143, 0.0
    %1148 = vadd.xlane.f32.xlu0 %v1147
    %v1149 = vpop.xlane.xlu0 %1148
    %v1150 = vsel %vm50, %v1144, 0.0
    %1151 = vadd.xlane.f32.xlu0 %v1150
    %v1152 = vpop.xlane.xlu0 %1151
    %v1153 = vmul.f32 %v1149, %v57
    %v1154 = vmul.f32 %v1152, %v57
    %v1155 = vsub.f32 %v1143, %v1153
    %v1156 = vsub.f32 %v1144, %v1154
    %v1157 = vmul.f32 %v1155, %v1155
    %v1158 = vmul.f32 %v1156, %v1156
    %v1159 = vsel %vm50, %v1157, 0.0
    %1160 = vadd.xlane.f32.xlu0 %v1159
    %v1161 = vpop.xlane.xlu0 %1160
    %v1162 = vsel %vm50, %v1158, 0.0
    %1163 = vadd.xlane.f32.xlu0 %v1162
    %v1164 = vpop.xlane.xlu0 %1163
    %v1165 = vmul.f32 %v1161, %v57
    %v1166 = vmul.f32 %v1164, %v57
    %v1167 = vadd.f32 %v1165, 1e-05
    %v1168 = vadd.f32 %v1166, 1e-05
    %v1169 = vrsqrt.pop %v1167
    %v1170 = vrsqrt.pop %v1168
    %v1171 = vmul.f32 %v1155, %v1169
    %v1172 = vmul.f32 %v1156, %v1170
    %v1174 = vlaneseq
    %v1175 = vshrl.u32 %v1174, 7
    %v1176 = vsub.s32 0, %v1175
    %v1177 = vrot.slane %v1145, %v1176
    %v1179 = vmul.f32 %v1171, %v1177
    %v1180 = vmul.f32 %v1172, %v1177
    %v1182 = vlaneseq
    %v1183 = vshrl.u32 %v1182, 7
    %v1184 = vsub.s32 0, %v1183
    %v1185 = vrot.slane %v1146, %v1184
    %v1187 = vadd.f32 %v1179, %v1185
    %v1188 = vadd.f32 %v1180, %v1185
    %v1189 = vpack.c.bf16 %v1188, %v1187
    %v1190 = vld [vmem:[%s9] sm:$0xf]
    %v1191 = vld [vmem:[%s9 + $0x4] sm:$0xf]
    %v1192 = vld [vmem:[%s9 + $0x8] sm:$0xf]
    %v1193 = vld [vmem:[%s9 + $0xc] sm:$0xf]
    %v1194 = vld [vmem:[%s10] sm:$0x1]
    %v1196 = vlaneseq
    %v1197 = vshrl.u32 %v1196, 7
    %v1198 = vsub.s32 0, %v1197
    %v1199 = vrot.slane %v1194, %v1198
    %v1205 = vunpack.c.l.b16 %v1190
    %v1206 = vunpack.c.l.b16 %v1191
    %v1207 = vunpack.c.l.b16 %v1192
    %v1208 = vunpack.c.l.b16 %v1193
    %v1209 = vpack.c.b16 %v1206, %v1205
    %v1210 = vpack.c.b16 %v1208, %v1207
    %v1214 = vsel %vm50, %v1189, 0
    %1216 = vmatprep.subr.bf16.mxu0 0
    %1217 = vmatpush1.bf16.msra.mxu0 %v1209
    %1218 = vmatprep.subr.bf16.mxu0 0
    %1219 = vmatpush1.bf16.msra.mxu0 %v1210
    %1220 = vmatprep.subr.bf16.mxu0 0
    %1221 = vmatpush1.bf16.msra.mxu0 0
    %1222 = vmatprep.subr.bf16.mxu0 0
    %1223 = vmatpush1.bf16.msra.mxu0 0
    %1224 = vmatprep.subr.bf16.mxu0 0
    %1225 = vmatpush1.bf16.msra.mxu0 0
    %1226 = vmatprep.subr.bf16.mxu0 0
    %1227 = vmatpush1.bf16.msra.mxu0 0
    %1228 = vmatprep.subr.bf16.mxu0 0
    %1229 = vmatpush1.bf16.msra.mxu0 0
    %1230 = vmatprep.subr.bf16.mxu0 0
    %1231 = vmatpush1.bf16.msra.mxu0 0
    %1232 = vmatprep.subr.bf16.mxu0 0
    %1233 = vmatpush1.bf16.msra.mxu0 0
    %1234 = vmatprep.subr.bf16.mxu0 0
    %1235 = vmatpush1.bf16.msra.mxu0 0
    %1236 = vmatprep.subr.bf16.mxu0 0
    %1237 = vmatpush1.bf16.msra.mxu0 0
    %1238 = vmatprep.subr.bf16.mxu0 0
    %1239 = vmatpush1.bf16.msra.mxu0 0
    %1240 = vmatprep.subr.bf16.mxu0 0
    %1241 = vmatpush1.bf16.msra.mxu0 0
    %1242 = vmatprep.subr.bf16.mxu0 0
    %1243 = vmatpush1.bf16.msra.mxu0 0
    %1244 = vmatprep.subr.bf16.mxu0 0
    %1245 = vmatpush1.bf16.msra.mxu0 0
    %1246 = vmatprep.subr.bf16.mxu0 0
    %1247 = vmatpush1.bf16.msra.mxu0 0
    %1248 = vmatprep.mubr.bf16.mxu0 0
    %1249 = vmatmul.mubr.bf16.gmra.mrb[0].mxu0 %v1214
    %v1250 = vpop.f32.mrb[0].mxu0
    %v1251 = vadd.f32 %v1199, %v1250
    %v1252 = vpop.f32.mrb[0].mxu0
    %v1253 = vpop.f32.mrb[0].mxu0
    %v1254 = vadd.f32 %v1199, %v1253
    %v1255 = vpop.f32.mrb[0].mxu0
    %1256 = vdwg.mxu0
    %v1257 = vmul.f32 %v1251, 0.5
    %v1258 = vmul.f32 %v1254, 0.5
    %v1259 = vrcp.pop 1.4142135
    %v1260 = vmul.f32 %v1251, %v1259
    %v1261 = vmul.f32 %v1254, %v1259
    %v1262 = verf.f32.pop %v1260
    %v1263 = verf.f32.pop %v1261
    %v1264 = vadd.f32 %v1262, 1.0
    %v1265 = vadd.f32 %v1263, 1.0
    %v1266 = vmul.f32 %v1257, %v1264
    %v1267 = vmul.f32 %v1258, %v1265
    %v1268 = vpack.c.bf16 %v1267, %v1266
    %v1269 = vld [vmem:[%s11] sm:$0xf]
    %v1270 = vld [vmem:[%s11 + $0x4] sm:$0xf]
    %v1271 = vld [vmem:[%s11 + $0x8] sm:$0xf]
    %v1272 = vld [vmem:[%s11 + $0xc] sm:$0xf]
    %v1273 = vld [vmem:[%s11 + $0x10] sm:$0xf]
    %v1274 = vld [vmem:[%s11 + $0x14] sm:$0xf]
    %v1275 = vld [vmem:[%s11 + $0x18] sm:$0xf]
    %v1276 = vld [vmem:[%s11 + $0x1c] sm:$0xf]
    %v1277 = vld [vmem:[%s11 + $0x20] sm:$0xf]
    %v1278 = vld [vmem:[%s11 + $0x24] sm:$0xf]
    %v1279 = vld [vmem:[%s11 + $0x28] sm:$0xf]
    %v1280 = vld [vmem:[%s11 + $0x2c] sm:$0xf]
    %v1281 = vld [vmem:[%s11 + $0x30] sm:$0xf]
    %v1282 = vld [vmem:[%s11 + $0x34] sm:$0xf]
    %v1283 = vld [vmem:[%s11 + $0x38] sm:$0xf]
    %v1284 = vld [vmem:[%s11 + $0x3c] sm:$0xf]
    %v1285 = vld [vmem:[%s12] sm:$0x1]
    %v1287 = vlaneseq
    %v1288 = vshrl.u32 %v1287, 7
    %v1289 = vsub.s32 0, %v1288
    %v1290 = vrot.slane %v1285, %v1289
    %v1308 = vunpack.c.l.b16 %v1269
    %v1309 = vunpack.c.l.b16 %v1270
    %v1310 = vunpack.c.l.b16 %v1271
    %v1311 = vunpack.c.l.b16 %v1272
    %v1312 = vunpack.c.l.b16 %v1273
    %v1313 = vunpack.c.l.b16 %v1274
    %v1314 = vunpack.c.l.b16 %v1275
    %v1315 = vunpack.c.l.b16 %v1276
    %v1316 = vunpack.c.l.b16 %v1277
    %v1317 = vunpack.c.l.b16 %v1278
    %v1318 = vunpack.c.l.b16 %v1279
    %v1319 = vunpack.c.l.b16 %v1280
    %v1320 = vunpack.c.l.b16 %v1281
    %v1321 = vunpack.c.l.b16 %v1282
    %v1322 = vunpack.c.l.b16 %v1283
    %v1323 = vunpack.c.l.b16 %v1284
    %v1324 = vpack.c.b16 %v1309, %v1308
    %v1325 = vpack.c.b16 %v1311, %v1310
    %v1326 = vpack.c.b16 %v1313, %v1312
    %v1327 = vpack.c.b16 %v1315, %v1314
    %v1328 = vpack.c.b16 %v1317, %v1316
    %v1329 = vpack.c.b16 %v1319, %v1318
    %v1330 = vpack.c.b16 %v1321, %v1320
    %v1331 = vpack.c.b16 %v1323, %v1322
    %1340 = vmatprep.subr.bf16.mxu0 0
    %1341 = vmatpush1.bf16.msra.mxu0 %v1324
    %1342 = vmatprep.subr.bf16.mxu0 0
    %1343 = vmatpush1.bf16.msra.mxu0 %v1325
    %1344 = vmatprep.subr.bf16.mxu0 0
    %1345 = vmatpush1.bf16.msra.mxu0 %v1326
    %1346 = vmatprep.subr.bf16.mxu0 0
    %1347 = vmatpush1.bf16.msra.mxu0 %v1327
    %1348 = vmatprep.subr.bf16.mxu0 0
    %1349 = vmatpush1.bf16.msra.mxu0 %v1328
    %1350 = vmatprep.subr.bf16.mxu0 0
    %1351 = vmatpush1.bf16.msra.mxu0 %v1329
    %1352 = vmatprep.subr.bf16.mxu0 0
    %1353 = vmatpush1.bf16.msra.mxu0 %v1330
    %1354 = vmatprep.subr.bf16.mxu0 0
    %1355 = vmatpush1.bf16.msra.mxu0 %v1331
    %1356 = vmatprep.subr.bf16.mxu0 0
    %1357 = vmatpush1.bf16.msra.mxu0 0
    %1358 = vmatprep.subr.bf16.mxu0 0
    %1359 = vmatpush1.bf16.msra.mxu0 0
    %1360 = vmatprep.subr.bf16.mxu0 0
    %1361 = vmatpush1.bf16.msra.mxu0 0
    %1362 = vmatprep.subr.bf16.mxu0 0
    %1363 = vmatpush1.bf16.msra.mxu0 0
    %1364 = vmatprep.subr.bf16.mxu0 0
    %1365 = vmatpush1.bf16.msra.mxu0 0
    %1366 = vmatprep.subr.bf16.mxu0 0
    %1367 = vmatpush1.bf16.msra.mxu0 0
    %1368 = vmatprep.subr.bf16.mxu0 0
    %1369 = vmatpush1.bf16.msra.mxu0 0
    %1370 = vmatprep.subr.bf16.mxu0 0
    %1371 = vmatpush1.bf16.msra.mxu0 0
    %1372 = vmatprep.mubr.bf16.mxu0 0
    %1373 = vmatmul.mubr.bf16.gmra.mrb[0].mxu0 %v1268
    %v1374 = vpop.f32.mrb[0].mxu0
    %v1375 = vadd.f32 %v1290, %v1374
    %v1376 = vpop.f32.mrb[0].mxu0
    %v1377 = vpop.f32.mrb[0].mxu0
    %v1378 = vadd.f32 %v1290, %v1377
    %v1379 = vpop.f32.mrb[0].mxu0
    %1380 = vdwg.mxu0
    %v1381 = vadd.f32 %v1143, %v1375
    %v1382 = vadd.f32 %v1144, %v1378
    %1383 = vst.msk [vmem:[#allocation2] sm:$0xff] %vm50, %v1381
    %1384 = vst.msk [vmem:[#allocation2 + $0x8] sm:$0xff] %vm50, %v1382
    // Predicated region
    $region54: #{tpu_custom_call.1} parent=1 // pred_check
      _
    $region55: #{tpu_custom_call.1} parent=1 // pred_check_branch
      %1386 = sbr.rel (0) target = $region57
    $region56: #{tpu_custom_call.1} parent=1 // pred_region
      %s1388 = ssub.s32 256, 256
      %1389 = vsyncadd [#allocation3], %s1388
      %s1390 = sshll.u32 [#allocation2], 4
      %s1391 = int_to_ptr.vmem [resolvable:$true] %s1390
      %1396 = dma.vmem_to_hbm [thread:$0]  %s1391, 256, %s13, [#allocation3], 128, 128, 8
    $region57: #{tpu_custom_call.1} parent=1 // pred_fallthru
      _
    // Predicated region
    $region58: #{tpu_custom_call.1} parent=1 // pred_check
      _
    $region59: #{tpu_custom_call.1} parent=1 // pred_check_branch
      %1398 = sbr.rel (0) target = $region61
    $region60: #{tpu_custom_call.1} parent=1 // pred_region
      %1399 = dma.done [#allocation3], 256
    $region61: #{tpu_custom_call.1} parent=1 // pred_fallthru
      _
    %1400 = vsyncpa [#allocation3], 1

</llo_original>
